<compile_context>
chip_gen: v7x
topology: tpu7x:2x2x1
jax: 0.10.0
libtpu: 0.0.40
codegen_flags: <defaults>
</compile_context>

<pallas_src>
import functools

import jax
import jax.numpy as jnp
from jax import lax
from jax.experimental import pallas as pl
from jax.experimental.pallas import tpu as pltpu

INPUT_SIZE = 3      # len(['co2', 'gdp', 'population'])
HIDDEN_SIZE = 128
NUM_LAYERS = 1      # single-layer LSTM, as in the module default
SUBLANE = 8         # f32 sublane tile
LANE = 128


def _lstm_kernel(xp_ref, w_hh_ref, w_out_ref, b_out_ref, out_ref, h_ref, c_ref,
                 *, t_chunk, t_total, unroll, needs_mask):
    """One T-chunk of the LSTM recurrence; final Linear on the last chunk.

    xp_ref:    (t_chunk, Bp, 4H)  hoisted input projection (x @ W_ih + b), gate
                                  order (i, f, o, g)
    w_hh_ref:  (H, 4H)            recurrent weight (possibly bf16)
    w_out_ref: (H, OUT_PAD)       final Linear weight, zero-padded to lane width
    b_out_ref: (1, OUT_PAD)       final Linear bias, zero-padded
    out_ref:   (Bp, OUT_PAD)      Linear(h_T); block index constant across the grid
    h_ref/c_ref: (Bp, H) f32      persistent carries across grid iterations
    """
    H = w_hh_ref.shape[0]
    pid = pl.program_id(0)

    @pl.when(pid == 0)
    def _():
        h_ref[...] = jnp.zeros_like(h_ref)
        c_ref[...] = jnp.zeros_like(c_ref)

    def step(lt, carry):
        h, c = carry
        # Reload W_hh from VMEM inside the step (cheap vld) rather than pinning
        # 32 vregs across the unrolled loop.
        w_hh = w_hh_ref[...]
        gates = xp_ref[lt].astype(jnp.float32) + jnp.dot(
            h.astype(w_hh.dtype), w_hh, preferred_element_type=jnp.float32)
        # Gate order (i, f, o, g): one transcendental block for the three sigmoids
        # (sigmoid(x) = 0.5*tanh(0.5*x) + 0.5 -> exactly one EUP op/element), one tanh for g.
        sig = 0.5 * jnp.tanh(0.5 * gates[:, : 3 * H]) + 0.5
        g_g = jnp.tanh(gates[:, 3 * H:])
        i_g = sig[:, 0:H]
        f_g = sig[:, H:2 * H]
        o_g = sig[:, 2 * H:3 * H]
        c_new = f_g * c + i_g * g_g
        h_new = o_g * jnp.tanh(c_new)
        if needs_mask:
            # Padded trailing timesteps (T padded up to a multiple of t_chunk):
            # freeze the carries so they don't corrupt h_T.
            keep = (pid * t_chunk + lt) < t_total
            h_new = jnp.where(keep, h_new, h)
            c_new = jnp.where(keep, c_new, c)
        return h_new, c_new

    h, c = lax.fori_loop(0, t_chunk, step, (h_ref[...], c_ref[...]), unroll=unroll)
    h_ref[...] = h
    c_ref[...] = c

    @pl.when(pid == pl.num_programs(0) - 1)
    def _():
        # Final Linear, lane-dense (OUT_PAD multiple of 128) -> unmasked stores.
        out_ref[...] = (
            jnp.dot(h, w_out_ref[...], preferred_element_type=jnp.float32)
            + b_out_ref[...])


def prepare_params(params, compute_dtype=jnp.bfloat16):
    """One-time weight prep: gate reorder (i,f,g,o)->(i,f,o,g), transposes, bias
    fusion, lane padding of the output head, recurrent-weight dtype cast."""
    H = params["w_hh"].shape[1]
    out_dim = params["w_out"].shape[0]
    out_pad = ((out_dim + LANE - 1) // LANE) * LANE

    def reorder(a):   # reorder gate blocks along axis 0 of a (4H, ...) array
        i, f, g, o = jnp.split(a, 4, axis=0)
        return jnp.concatenate([i, f, o, g], axis=0)

    w_ih = reorder(params["w_ih"])                     # (4H, I)
    w_hh = reorder(params["w_hh"])                     # (4H, H)
    b = reorder(params["b_ih"] + params["b_hh"])       # (4H,)

    w_out_p = jnp.zeros((H, out_pad), jnp.float32).at[:, :out_dim].set(
        jnp.transpose(params["w_out"]).astype(jnp.float32))
    b_out_p = jnp.zeros((1, out_pad), jnp.float32).at[0, :out_dim].set(
        params["b_out"].astype(jnp.float32))

    return {
        "w_ih_t": jnp.transpose(w_ih).astype(jnp.float32),    # (I, 4H); used once (XLA)
        "w_hh_t": jnp.transpose(w_hh).astype(compute_dtype),  # (H, 4H); in the loop
        "b": b[None, :].astype(jnp.float32),                   # (1, 4H)
        "w_out_t": w_out_p,                                    # (H, OUT_PAD)
        "b_out": b_out_p,                                      # (1, OUT_PAD)
    }


@functools.partial(jax.jit, static_argnames=("t_chunk", "unroll", "xproj_dtype"))
def lstm_model_forward(x, prep, *, t_chunk=128, unroll=8, xproj_dtype=jnp.float32):
    """x: (B, T, I) float32, batch_first like PyTorch. Returns (B, I)."""
    B, T, I = x.shape
    H = prep["w_hh_t"].shape[0]
    G = 4 * H
    out_pad = prep["w_out_t"].shape[1]
    B_pad = max(SUBLANE, ((B + SUBLANE - 1) // SUBLANE) * SUBLANE)

    # ---- Hoisted input projection in XLA (tiny K=3 matmul + fused bias), time-major.
    x_tm = jnp.transpose(x, (1, 0, 2))                           # (T, B, I)
    if B_pad != B:
        x_tm = jnp.pad(x_tm, ((0, 0), (0, B_pad - B), (0, 0)))
    xproj = x_tm.reshape(T * B_pad, I) @ prep["w_ih_t"] + prep["b"]   # (T*Bp, 4H) f32
    xproj = xproj.reshape(T, B_pad, G).astype(xproj_dtype)

    # ---- Chunk the sequence over a 1-D grid on T (keeps VMEM bounded for long T).
    t_chunk = max(1, min(t_chunk, T))
    n_chunks = pl.cdiv(T, t_chunk)
    T_pad = n_chunks * t_chunk
    if T_pad != T:
        xproj = jnp.pad(xproj, ((0, T_pad - T), (0, 0), (0, 0)))
    unroll = max(1, min(unroll, t_chunk))

    kernel = functools.partial(
        _lstm_kernel, t_chunk=t_chunk, t_total=T, unroll=unroll,
        needs_mask=(T_pad != T))

    itemsize = jnp.dtype(xproj_dtype).itemsize
    cost = pl.CostEstimate(
        flops=2 * T * B_pad * H * G            # recurrent matmuls
        + 8 * T * B_pad * G                    # gate elementwise
        + 2 * B_pad * H * out_pad,             # final Linear
        transcendentals=5 * T * B_pad * H,     # 4H gate tanh + H tanh(c) per step
        bytes_accessed=(T_pad * B_pad * G * itemsize
                        + prep["w_hh_t"].size * prep["w_hh_t"].dtype.itemsize
                        + (H + 1) * out_pad * 4
                        + B_pad * out_pad * 4),
    )

    out = pl.pallas_call(
        kernel,
        out_shape=jax.ShapeDtypeStruct((B_pad, out_pad), jnp.float32),
        grid=(n_chunks,),
        in_specs=[
            pl.BlockSpec((t_chunk, B_pad, G), lambda t: (t, 0, 0)),   # xproj chunk
            pl.BlockSpec((H, G), lambda t: (0, 0)),                   # W_hh (resident)
            pl.BlockSpec((H, out_pad), lambda t: (0, 0)),             # W_out
            pl.BlockSpec((1, out_pad), lambda t: (0, 0)),             # b_out
        ],
        out_specs=pl.BlockSpec((B_pad, out_pad), lambda t: (0, 0)),
        scratch_shapes=[pltpu.VMEM((B_pad, H), jnp.float32),          # h carry
                        pltpu.VMEM((B_pad, H), jnp.float32)],         # c carry
        compiler_params=pltpu.CompilerParams(
            dimension_semantics=("arbitrary",)),
        cost_estimate=cost,
    )(xproj, prep["w_hh_t"], prep["w_out_t"], prep["b_out"])

    return out[:B, :I]


def init_params(key, input_size=INPUT_SIZE, hidden_size=HIDDEN_SIZE):
    """Deterministic init matching PyTorch LSTM/Linear param shapes (gate order i,f,g,o)."""
    k = jax.random.split(key, 6)
    s = 1.0 / jnp.sqrt(hidden_size)
    return {
        "w_ih": jax.random.uniform(k[0], (4 * hidden_size, input_size), jnp.float32, -s, s),
        "w_hh": jax.random.uniform(k[1], (4 * hidden_size, hidden_size), jnp.float32, -s, s),
        "b_ih": jax.random.uniform(k[2], (4 * hidden_size,), jnp.float32, -s, s),
        "b_hh": jax.random.uniform(k[3], (4 * hidden_size,), jnp.float32, -s, s),
        "w_out": jax.random.uniform(k[4], (input_size, hidden_size), jnp.float32, -s, s),
        "b_out": jax.random.uniform(k[5], (input_size,), jnp.float32, -s, s),
    }


def reference_forward(x, params):
    """Pure-JAX reference of the same forward (PyTorch gate order) for a sanity check."""
    def step(carry, x_t):
        h, c = carry
        H = h.shape[1]
        gates = x_t @ params["w_ih"].T + h @ params["w_hh"].T + params["b_ih"] + params["b_hh"]
        i_g = jax.nn.sigmoid(gates[:, 0:H])
        f_g = jax.nn.sigmoid(gates[:, H:2 * H])
        g_g = jnp.tanh(gates[:, 2 * H:3 * H])
        o_g = jax.nn.sigmoid(gates[:, 3 * H:4 * H])
        c_new = f_g * c + i_g * g_g
        h_new = o_g * jnp.tanh(c_new)
        return (h_new, c_new), None

    B = x.shape[0]
    H = params["w_hh"].shape[1]
    h0 = jnp.zeros((B, H), jnp.float32)
    c0 = jnp.zeros((B, H), jnp.float32)
    (h_T, _), _ = lax.scan(step, (h0, c0), jnp.transpose(x, (1, 0, 2)))
    return h_T @ params["w_out"].T + params["b_out"]


if __name__ == "__main__":
    key = jax.random.PRNGKey(0)
    k_x, k_p, k_x2 = jax.random.split(key, 3)

    B, T = 4, 8
    x = jax.random.normal(k_x, (B, T, INPUT_SIZE), jnp.float32)
    params = init_params(k_p)

    ref = jax.block_until_ready(reference_forward(x, params))

    # f32 recurrent-weight path (exact-ish vs. reference).
    prep_f32 = prepare_params(params, compute_dtype=jnp.float32)
    out_f32 = jax.block_until_ready(lstm_model_forward(x, prep_f32))
    assert out_f32.shape == (B, INPUT_SIZE)
    assert jnp.allclose(out_f32, ref, atol=1e-4, rtol=1e-4)

    # bf16 recurrent-weight fast path (default; MXU-native on all generations),
    # f32 accumulation and f32 h/c carries.
    prep_bf16 = prepare_params(params, compute_dtype=jnp.bfloat16)
    out_bf16 = jax.block_until_ready(lstm_model_forward(x, prep_bf16))
    assert out_bf16.shape == (B, INPUT_SIZE)
    assert jnp.allclose(out_bf16, ref, atol=2e-2, rtol=2e-2)

    # Exercise the T-chunked grid + padded-tail path (T not a multiple of t_chunk).
    T2 = 20
    x2 = jax.random.normal(k_x2, (B, T2, INPUT_SIZE), jnp.float32)
    ref2 = jax.block_until_ready(reference_forward(x2, params))
    out2 = jax.block_until_ready(lstm_model_forward(x2, prep_f32, t_chunk=8, unroll=4))
    assert out2.shape == (B, INPUT_SIZE)
    assert jnp.allclose(out2, ref2, atol=1e-4, rtol=1e-4)

    print("KERNEL_OK")
</pallas_src>

<mosaic_0001>
module attributes {stable_mosaic.version = 11 : i64} {
  func.func @_lstm_kernel(%arg0: i32, %arg1: memref<8x8x512xf32, #tpu.memory_space<vmem>>, %arg2: memref<128x512xf32, #tpu.memory_space<vmem>>, %arg3: memref<128x128xf32, #tpu.memory_space<vmem>>, %arg4: memref<1x128xf32, #tpu.memory_space<vmem>>, %arg5: memref<8x128xf32, #tpu.memory_space<vmem>>, %arg6: memref<8x128xf32, #tpu.memory_space<vmem>>, %arg7: memref<8x128xf32, #tpu.memory_space<vmem>>) attributes {dimension_semantics = [#tpu.dimension_semantics<arbitrary>], iteration_bounds = array<i64: 1>, scalar_prefetch = 0 : i64, scratch_operands = 2 : i64, tpu.core_type = #tpu.core_type<tc>, window_params = [{transform_indices = @transform_0, window_bounds = array<i64: 8, 8, 512>}, {pipeline_mode = #tpu.pipeline_mode<synchronous>, transform_indices = @transform_1, window_bounds = array<i64: 128, 512>}, {pipeline_mode = #tpu.pipeline_mode<synchronous>, transform_indices = @transform_2, window_bounds = array<i64: 128, 128>}, {pipeline_mode = #tpu.pipeline_mode<synchronous>, transform_indices = @transform_3, window_bounds = array<i64: 1, 128>}, {pipeline_mode = #tpu.pipeline_mode<synchronous>, transform_indices = @transform_4, window_bounds = array<i64: 8, 128>}]} {
    %c0_i32 = arith.constant 0 : i32
    %0 = arith.cmpi eq, %arg0, %c0_i32 : i32
    %1 = arith.extui %0 : i1 to i32
    %c0_i32_0 = arith.constant 0 : i32
    %2 = arith.cmpi ne, %1, %c0_i32_0 : i32
    scf.if %2 {
      %cst_74 = arith.constant 0.000000e+00 : f32
      %202 = vector.broadcast %cst_74 : f32 to vector<8x128xf32>
      %c0_75 = arith.constant 0 : index
      %c0_76 = arith.constant 0 : index
      %203 = vector.load %arg6[%c0_75, %c0_76] : memref<8x128xf32, #tpu.memory_space<vmem>>, vector<8x128xf32>
      tpu.vector_store %arg6[%c0_75, %c0_76], %202 {strides = array<i32>} : memref<8x128xf32, #tpu.memory_space<vmem>>, vector<8x128xf32>,
      %cst_77 = arith.constant 0.000000e+00 : f32
      %204 = vector.broadcast %cst_77 : f32 to vector<8x128xf32>
      %c0_78 = arith.constant 0 : index
      %c0_79 = arith.constant 0 : index
      %205 = vector.load %arg7[%c0_78, %c0_79] : memref<8x128xf32, #tpu.memory_space<vmem>>, vector<8x128xf32>
      tpu.vector_store %arg7[%c0_78, %c0_79], %204 {strides = array<i32>} : memref<8x128xf32, #tpu.memory_space<vmem>>, vector<8x128xf32>,
    } else {
    }
    %c0 = arith.constant 0 : index
    %c0_1 = arith.constant 0 : index
    %3 = vector.load %arg6[%c0, %c0_1] : memref<8x128xf32, #tpu.memory_space<vmem>>, vector<8x128xf32>
    %c0_2 = arith.constant 0 : index
    %c0_3 = arith.constant 0 : index
    %4 = vector.load %arg7[%c0_2, %c0_3] : memref<8x128xf32, #tpu.memory_space<vmem>>, vector<8x128xf32>
    %c0_i32_4 = arith.constant 0 : i32
    %c0_5 = arith.constant 0 : index
    %c0_6 = arith.constant 0 : index
    %5 = vector.load %arg2[%c0_5, %c0_6] : memref<128x512xf32, #tpu.memory_space<vmem>>, vector<128x512xf32>
    %6 = arith.index_cast %c0_i32_4 : i32 to index
    %c0_7 = arith.constant 0 : index
    %c0_8 = arith.constant 0 : index
    %7 = vector.load %arg1[%6, %c0_7, %c0_8] : memref<8x8x512xf32, #tpu.memory_space<vmem>>, vector<1x8x512xf32>
    %8 = vector.shape_cast %7 : vector<1x8x512xf32> to vector<8x512xf32>
    %cst = arith.constant dense<0.000000e+00> : vector<8x512xf32>
    %9 = tpu.matmul %3, %5, %cst {dimension_numbers = #tpu.dot_dimension_numbers<[1], [0], [0], [1], [0, 0, 1, 1], [], []>} : vector<8x128xf32>, vector<128x512xf32>, vector<8x512xf32> -> vector<8x512xf32>
    %10 = arith.addf %8, %9 : vector<8x512xf32>
    %11 = vector.extract_strided_slice %10 {offsets = [0, 0], sizes = [8, 384], strides = [1, 1]} : vector<8x512xf32> to vector<8x384xf32>
    %cst_9 = arith.constant 5.000000e-01 : f32
    %12 = vector.broadcast %cst_9 : f32 to vector<8x384xf32>
    %13 = arith.mulf %12, %11 : vector<8x384xf32>
    %14 = math.tanh %13 : vector<8x384xf32>
    %cst_10 = arith.constant 5.000000e-01 : f32
    %15 = vector.broadcast %cst_10 : f32 to vector<8x384xf32>
    %16 = arith.mulf %15, %14 : vector<8x384xf32>
    %cst_11 = arith.constant 5.000000e-01 : f32
    %17 = vector.broadcast %cst_11 : f32 to vector<8x384xf32>
    %18 = arith.addf %16, %17 : vector<8x384xf32>
    %19 = vector.extract_strided_slice %10 {offsets = [0, 384], sizes = [8, 128], strides = [1, 1]} : vector<8x512xf32> to vector<8x128xf32>
    %20 = math.tanh %19 : vector<8x128xf32>
    %21 = vector.extract_strided_slice %18 {offsets = [0, 0], sizes = [8, 128], strides = [1, 1]} : vector<8x384xf32> to vector<8x128xf32>
    %22 = vector.extract_strided_slice %18 {offsets = [0, 128], sizes = [8, 128], strides = [1, 1]} : vector<8x384xf32> to vector<8x128xf32>
    %23 = vector.extract_strided_slice %18 {offsets = [0, 256], sizes = [8, 128], strides = [1, 1]} : vector<8x384xf32> to vector<8x128xf32>
    %24 = arith.mulf %22, %4 : vector<8x128xf32>
    %25 = arith.mulf %21, %20 : vector<8x128xf32>
    %26 = arith.addf %24, %25 : vector<8x128xf32>
    %27 = math.tanh %26 : vector<8x128xf32>
    %28 = arith.mulf %23, %27 : vector<8x128xf32>
    %c1_i32 = arith.constant 1 : i32
    %c0_12 = arith.constant 0 : index
    %c0_13 = arith.constant 0 : index
    %29 = vector.load %arg2[%c0_12, %c0_13] : memref<128x512xf32, #tpu.memory_space<vmem>>, vector<128x512xf32>
    %30 = arith.index_cast %c1_i32 : i32 to index
    %c0_14 = arith.constant 0 : index
    %c0_15 = arith.constant 0 : index
    %31 = vector.load %arg1[%30, %c0_14, %c0_15] : memref<8x8x512xf32, #tpu.memory_space<vmem>>, vector<1x8x512xf32>
    %32 = vector.shape_cast %31 : vector<1x8x512xf32> to vector<8x512xf32>
    %cst_16 = arith.constant dense<0.000000e+00> : vector<8x512xf32>
    %33 = tpu.matmul %28, %29, %cst_16 {dimension_numbers = #tpu.dot_dimension_numbers<[1], [0], [0], [1], [0, 0, 1, 1], [], []>} : vector<8x128xf32>, vector<128x512xf32>, vector<8x512xf32> -> vector<8x512xf32>
    %34 = arith.addf %32, %33 : vector<8x512xf32>
    %35 = vector.extract_strided_slice %34 {offsets = [0, 0], sizes = [8, 384], strides = [1, 1]} : vector<8x512xf32> to vector<8x384xf32>
    %cst_17 = arith.constant 5.000000e-01 : f32
    %36 = vector.broadcast %cst_17 : f32 to vector<8x384xf32>
    %37 = arith.mulf %36, %35 : vector<8x384xf32>
    %38 = math.tanh %37 : vector<8x384xf32>
    %cst_18 = arith.constant 5.000000e-01 : f32
    %39 = vector.broadcast %cst_18 : f32 to vector<8x384xf32>
    %40 = arith.mulf %39, %38 : vector<8x384xf32>
    %cst_19 = arith.constant 5.000000e-01 : f32
    %41 = vector.broadcast %cst_19 : f32 to vector<8x384xf32>
    %42 = arith.addf %40, %41 : vector<8x384xf32>
    %43 = vector.extract_strided_slice %34 {offsets = [0, 384], sizes = [8, 128], strides = [1, 1]} : vector<8x512xf32> to vector<8x128xf32>
    %44 = math.tanh %43 : vector<8x128xf32>
    %45 = vector.extract_strided_slice %42 {offsets = [0, 0], sizes = [8, 128], strides = [1, 1]} : vector<8x384xf32> to vector<8x128xf32>
    %46 = vector.extract_strided_slice %42 {offsets = [0, 128], sizes = [8, 128], strides = [1, 1]} : vector<8x384xf32> to vector<8x128xf32>
    %47 = vector.extract_strided_slice %42 {offsets = [0, 256], sizes = [8, 128], strides = [1, 1]} : vector<8x384xf32> to vector<8x128xf32>
    %48 = arith.mulf %46, %26 : vector<8x128xf32>
    %49 = arith.mulf %45, %44 : vector<8x128xf32>
    %50 = arith.addf %48, %49 : vector<8x128xf32>
    %51 = math.tanh %50 : vector<8x128xf32>
    %52 = arith.mulf %47, %51 : vector<8x128xf32>
    %c2_i32 = arith.constant 2 : i32
    %c0_20 = arith.constant 0 : index
    %c0_21 = arith.constant 0 : index
    %53 = vector.load %arg2[%c0_20, %c0_21] : memref<128x512xf32, #tpu.memory_space<vmem>>, vector<128x512xf32>
    %54 = arith.index_cast %c2_i32 : i32 to index
    %c0_22 = arith.constant 0 : index
    %c0_23 = arith.constant 0 : index
    %55 = vector.load %arg1[%54, %c0_22, %c0_23] : memref<8x8x512xf32, #tpu.memory_space<vmem>>, vector<1x8x512xf32>
    %56 = vector.shape_cast %55 : vector<1x8x512xf32> to vector<8x512xf32>
    %cst_24 = arith.constant dense<0.000000e+00> : vector<8x512xf32>
    %57 = tpu.matmul %52, %53, %cst_24 {dimension_numbers = #tpu.dot_dimension_numbers<[1], [0], [0], [1], [0, 0, 1, 1], [], []>} : vector<8x128xf32>, vector<128x512xf32>, vector<8x512xf32> -> vector<8x512xf32>
    %58 = arith.addf %56, %57 : vector<8x512xf32>
    %59 = vector.extract_strided_slice %58 {offsets = [0, 0], sizes = [8, 384], strides = [1, 1]} : vector<8x512xf32> to vector<8x384xf32>
    %cst_25 = arith.constant 5.000000e-01 : f32
    %60 = vector.broadcast %cst_25 : f32 to vector<8x384xf32>
    %61 = arith.mulf %60, %59 : vector<8x384xf32>
    %62 = math.tanh %61 : vector<8x384xf32>
    %cst_26 = arith.constant 5.000000e-01 : f32
    %63 = vector.broadcast %cst_26 : f32 to vector<8x384xf32>
    %64 = arith.mulf %63, %62 : vector<8x384xf32>
    %cst_27 = arith.constant 5.000000e-01 : f32
    %65 = vector.broadcast %cst_27 : f32 to vector<8x384xf32>
    %66 = arith.addf %64, %65 : vector<8x384xf32>
    %67 = vector.extract_strided_slice %58 {offsets = [0, 384], sizes = [8, 128], strides = [1, 1]} : vector<8x512xf32> to vector<8x128xf32>
    %68 = math.tanh %67 : vector<8x128xf32>
    %69 = vector.extract_strided_slice %66 {offsets = [0, 0], sizes = [8, 128], strides = [1, 1]} : vector<8x384xf32> to vector<8x128xf32>
    %70 = vector.extract_strided_slice %66 {offsets = [0, 128], sizes = [8, 128], strides = [1, 1]} : vector<8x384xf32> to vector<8x128xf32>
    %71 = vector.extract_strided_slice %66 {offsets = [0, 256], sizes = [8, 128], strides = [1, 1]} : vector<8x384xf32> to vector<8x128xf32>
    %72 = arith.mulf %70, %50 : vector<8x128xf32>
    %73 = arith.mulf %69, %68 : vector<8x128xf32>
    %74 = arith.addf %72, %73 : vector<8x128xf32>
    %75 = math.tanh %74 : vector<8x128xf32>
    %76 = arith.mulf %71, %75 : vector<8x128xf32>
    %c3_i32 = arith.constant 3 : i32
    %c0_28 = arith.constant 0 : index
    %c0_29 = arith.constant 0 : index
    %77 = vector.load %arg2[%c0_28, %c0_29] : memref<128x512xf32, #tpu.memory_space<vmem>>, vector<128x512xf32>
    %78 = arith.index_cast %c3_i32 : i32 to index
    %c0_30 = arith.constant 0 : index
    %c0_31 = arith.constant 0 : index
    %79 = vector.load %arg1[%78, %c0_30, %c0_31] : memref<8x8x512xf32, #tpu.memory_space<vmem>>, vector<1x8x512xf32>
    %80 = vector.shape_cast %79 : vector<1x8x512xf32> to vector<8x512xf32>
    %cst_32 = arith.constant dense<0.000000e+00> : vector<8x512xf32>
    %81 = tpu.matmul %76, %77, %cst_32 {dimension_numbers = #tpu.dot_dimension_numbers<[1], [0], [0], [1], [0, 0, 1, 1], [], []>} : vector<8x128xf32>, vector<128x512xf32>, vector<8x512xf32> -> vector<8x512xf32>
    %82 = arith.addf %80, %81 : vector<8x512xf32>
    %83 = vector.extract_strided_slice %82 {offsets = [0, 0], sizes = [8, 384], strides = [1, 1]} : vector<8x512xf32> to vector<8x384xf32>
    %cst_33 = arith.constant 5.000000e-01 : f32
    %84 = vector.broadcast %cst_33 : f32 to vector<8x384xf32>
    %85 = arith.mulf %84, %83 : vector<8x384xf32>
    %86 = math.tanh %85 : vector<8x384xf32>
    %cst_34 = arith.constant 5.000000e-01 : f32
    %87 = vector.broadcast %cst_34 : f32 to vector<8x384xf32>
    %88 = arith.mulf %87, %86 : vector<8x384xf32>
    %cst_35 = arith.constant 5.000000e-01 : f32
    %89 = vector.broadcast %cst_35 : f32 to vector<8x384xf32>
    %90 = arith.addf %88, %89 : vector<8x384xf32>
    %91 = vector.extract_strided_slice %82 {offsets = [0, 384], sizes = [8, 128], strides = [1, 1]} : vector<8x512xf32> to vector<8x128xf32>
    %92 = math.tanh %91 : vector<8x128xf32>
    %93 = vector.extract_strided_slice %90 {offsets = [0, 0], sizes = [8, 128], strides = [1, 1]} : vector<8x384xf32> to vector<8x128xf32>
    %94 = vector.extract_strided_slice %90 {offsets = [0, 128], sizes = [8, 128], strides = [1, 1]} : vector<8x384xf32> to vector<8x128xf32>
    %95 = vector.extract_strided_slice %90 {offsets = [0, 256], sizes = [8, 128], strides = [1, 1]} : vector<8x384xf32> to vector<8x128xf32>
    %96 = arith.mulf %94, %74 : vector<8x128xf32>
    %97 = arith.mulf %93, %92 : vector<8x128xf32>
    %98 = arith.addf %96, %97 : vector<8x128xf32>
    %99 = math.tanh %98 : vector<8x128xf32>
    %100 = arith.mulf %95, %99 : vector<8x128xf32>
    %c4_i32 = arith.constant 4 : i32
    %c0_36 = arith.constant 0 : index
    %c0_37 = arith.constant 0 : index
    %101 = vector.load %arg2[%c0_36, %c0_37] : memref<128x512xf32, #tpu.memory_space<vmem>>, vector<128x512xf32>
    %102 = arith.index_cast %c4_i32 : i32 to index
    %c0_38 = arith.constant 0 : index
    %c0_39 = arith.constant 0 : index
    %103 = vector.load %arg1[%102, %c0_38, %c0_39] : memref<8x8x512xf32, #tpu.memory_space<vmem>>, vector<1x8x512xf32>
    %104 = vector.shape_cast %103 : vector<1x8x512xf32> to vector<8x512xf32>
    %cst_40 = arith.constant dense<0.000000e+00> : vector<8x512xf32>
    %105 = tpu.matmul %100, %101, %cst_40 {dimension_numbers = #tpu.dot_dimension_numbers<[1], [0], [0], [1], [0, 0, 1, 1], [], []>} : vector<8x128xf32>, vector<128x512xf32>, vector<8x512xf32> -> vector<8x512xf32>
    %106 = arith.addf %104, %105 : vector<8x512xf32>
    %107 = vector.extract_strided_slice %106 {offsets = [0, 0], sizes = [8, 384], strides = [1, 1]} : vector<8x512xf32> to vector<8x384xf32>
    %cst_41 = arith.constant 5.000000e-01 : f32
    %108 = vector.broadcast %cst_41 : f32 to vector<8x384xf32>
    %109 = arith.mulf %108, %107 : vector<8x384xf32>
    %110 = math.tanh %109 : vector<8x384xf32>
    %cst_42 = arith.constant 5.000000e-01 : f32
    %111 = vector.broadcast %cst_42 : f32 to vector<8x384xf32>
    %112 = arith.mulf %111, %110 : vector<8x384xf32>
    %cst_43 = arith.constant 5.000000e-01 : f32
    %113 = vector.broadcast %cst_43 : f32 to vector<8x384xf32>
    %114 = arith.addf %112, %113 : vector<8x384xf32>
    %115 = vector.extract_strided_slice %106 {offsets = [0, 384], sizes = [8, 128], strides = [1, 1]} : vector<8x512xf32> to vector<8x128xf32>
    %116 = math.tanh %115 : vector<8x128xf32>
    %117 = vector.extract_strided_slice %114 {offsets = [0, 0], sizes = [8, 128], strides = [1, 1]} : vector<8x384xf32> to vector<8x128xf32>
    %118 = vector.extract_strided_slice %114 {offsets = [0, 128], sizes = [8, 128], strides = [1, 1]} : vector<8x384xf32> to vector<8x128xf32>
    %119 = vector.extract_strided_slice %114 {offsets = [0, 256], sizes = [8, 128], strides = [1, 1]} : vector<8x384xf32> to vector<8x128xf32>
    %120 = arith.mulf %118, %98 : vector<8x128xf32>
    %121 = arith.mulf %117, %116 : vector<8x128xf32>
    %122 = arith.addf %120, %121 : vector<8x128xf32>
    %123 = math.tanh %122 : vector<8x128xf32>
    %124 = arith.mulf %119, %123 : vector<8x128xf32>
    %c5_i32 = arith.constant 5 : i32
    %c0_44 = arith.constant 0 : index
    %c0_45 = arith.constant 0 : index
    %125 = vector.load %arg2[%c0_44, %c0_45] : memref<128x512xf32, #tpu.memory_space<vmem>>, vector<128x512xf32>
    %126 = arith.index_cast %c5_i32 : i32 to index
    %c0_46 = arith.constant 0 : index
    %c0_47 = arith.constant 0 : index
    %127 = vector.load %arg1[%126, %c0_46, %c0_47] : memref<8x8x512xf32, #tpu.memory_space<vmem>>, vector<1x8x512xf32>
    %128 = vector.shape_cast %127 : vector<1x8x512xf32> to vector<8x512xf32>
    %cst_48 = arith.constant dense<0.000000e+00> : vector<8x512xf32>
    %129 = tpu.matmul %124, %125, %cst_48 {dimension_numbers = #tpu.dot_dimension_numbers<[1], [0], [0], [1], [0, 0, 1, 1], [], []>} : vector<8x128xf32>, vector<128x512xf32>, vector<8x512xf32> -> vector<8x512xf32>
    %130 = arith.addf %128, %129 : vector<8x512xf32>
    %131 = vector.extract_strided_slice %130 {offsets = [0, 0], sizes = [8, 384], strides = [1, 1]} : vector<8x512xf32> to vector<8x384xf32>
    %cst_49 = arith.constant 5.000000e-01 : f32
    %132 = vector.broadcast %cst_49 : f32 to vector<8x384xf32>
    %133 = arith.mulf %132, %131 : vector<8x384xf32>
    %134 = math.tanh %133 : vector<8x384xf32>
    %cst_50 = arith.constant 5.000000e-01 : f32
    %135 = vector.broadcast %cst_50 : f32 to vector<8x384xf32>
    %136 = arith.mulf %135, %134 : vector<8x384xf32>
    %cst_51 = arith.constant 5.000000e-01 : f32
    %137 = vector.broadcast %cst_51 : f32 to vector<8x384xf32>
    %138 = arith.addf %136, %137 : vector<8x384xf32>
    %139 = vector.extract_strided_slice %130 {offsets = [0, 384], sizes = [8, 128], strides = [1, 1]} : vector<8x512xf32> to vector<8x128xf32>
    %140 = math.tanh %139 : vector<8x128xf32>
    %141 = vector.extract_strided_slice %138 {offsets = [0, 0], sizes = [8, 128], strides = [1, 1]} : vector<8x384xf32> to vector<8x128xf32>
    %142 = vector.extract_strided_slice %138 {offsets = [0, 128], sizes = [8, 128], strides = [1, 1]} : vector<8x384xf32> to vector<8x128xf32>
    %143 = vector.extract_strided_slice %138 {offsets = [0, 256], sizes = [8, 128], strides = [1, 1]} : vector<8x384xf32> to vector<8x128xf32>
    %144 = arith.mulf %142, %122 : vector<8x128xf32>
    %145 = arith.mulf %141, %140 : vector<8x128xf32>
    %146 = arith.addf %144, %145 : vector<8x128xf32>
    %147 = math.tanh %146 : vector<8x128xf32>
    %148 = arith.mulf %143, %147 : vector<8x128xf32>
    %c6_i32 = arith.constant 6 : i32
    %c0_52 = arith.constant 0 : index
    %c0_53 = arith.constant 0 : index
    %149 = vector.load %arg2[%c0_52, %c0_53] : memref<128x512xf32, #tpu.memory_space<vmem>>, vector<128x512xf32>
    %150 = arith.index_cast %c6_i32 : i32 to index
    %c0_54 = arith.constant 0 : index
    %c0_55 = arith.constant 0 : index
    %151 = vector.load %arg1[%150, %c0_54, %c0_55] : memref<8x8x512xf32, #tpu.memory_space<vmem>>, vector<1x8x512xf32>
    %152 = vector.shape_cast %151 : vector<1x8x512xf32> to vector<8x512xf32>
    %cst_56 = arith.constant dense<0.000000e+00> : vector<8x512xf32>
    %153 = tpu.matmul %148, %149, %cst_56 {dimension_numbers = #tpu.dot_dimension_numbers<[1], [0], [0], [1], [0, 0, 1, 1], [], []>} : vector<8x128xf32>, vector<128x512xf32>, vector<8x512xf32> -> vector<8x512xf32>
    %154 = arith.addf %152, %153 : vector<8x512xf32>
    %155 = vector.extract_strided_slice %154 {offsets = [0, 0], sizes = [8, 384], strides = [1, 1]} : vector<8x512xf32> to vector<8x384xf32>
    %cst_57 = arith.constant 5.000000e-01 : f32
    %156 = vector.broadcast %cst_57 : f32 to vector<8x384xf32>
    %157 = arith.mulf %156, %155 : vector<8x384xf32>
    %158 = math.tanh %157 : vector<8x384xf32>
    %cst_58 = arith.constant 5.000000e-01 : f32
    %159 = vector.broadcast %cst_58 : f32 to vector<8x384xf32>
    %160 = arith.mulf %159, %158 : vector<8x384xf32>
    %cst_59 = arith.constant 5.000000e-01 : f32
    %161 = vector.broadcast %cst_59 : f32 to vector<8x384xf32>
    %162 = arith.addf %160, %161 : vector<8x384xf32>
    %163 = vector.extract_strided_slice %154 {offsets = [0, 384], sizes = [8, 128], strides = [1, 1]} : vector<8x512xf32> to vector<8x128xf32>
    %164 = math.tanh %163 : vector<8x128xf32>
    %165 = vector.extract_strided_slice %162 {offsets = [0, 0], sizes = [8, 128], strides = [1, 1]} : vector<8x384xf32> to vector<8x128xf32>
    %166 = vector.extract_strided_slice %162 {offsets = [0, 128], sizes = [8, 128], strides = [1, 1]} : vector<8x384xf32> to vector<8x128xf32>
    %167 = vector.extract_strided_slice %162 {offsets = [0, 256], sizes = [8, 128], strides = [1, 1]} : vector<8x384xf32> to vector<8x128xf32>
    %168 = arith.mulf %166, %146 : vector<8x128xf32>
    %169 = arith.mulf %165, %164 : vector<8x128xf32>
    %170 = arith.addf %168, %169 : vector<8x128xf32>
    %171 = math.tanh %170 : vector<8x128xf32>
    %172 = arith.mulf %167, %171 : vector<8x128xf32>
    %c7_i32 = arith.constant 7 : i32
    %c0_60 = arith.constant 0 : index
    %c0_61 = arith.constant 0 : index
    %173 = vector.load %arg2[%c0_60, %c0_61] : memref<128x512xf32, #tpu.memory_space<vmem>>, vector<128x512xf32>
    %174 = arith.index_cast %c7_i32 : i32 to index
    %c0_62 = arith.constant 0 : index
    %c0_63 = arith.constant 0 : index
    %175 = vector.load %arg1[%174, %c0_62, %c0_63] : memref<8x8x512xf32, #tpu.memory_space<vmem>>, vector<1x8x512xf32>
    %176 = vector.shape_cast %175 : vector<1x8x512xf32> to vector<8x512xf32>
    %cst_64 = arith.constant dense<0.000000e+00> : vector<8x512xf32>
    %177 = tpu.matmul %172, %173, %cst_64 {dimension_numbers = #tpu.dot_dimension_numbers<[1], [0], [0], [1], [0, 0, 1, 1], [], []>} : vector<8x128xf32>, vector<128x512xf32>, vector<8x512xf32> -> vector<8x512xf32>
    %178 = arith.addf %176, %177 : vector<8x512xf32>
    %179 = vector.extract_strided_slice %178 {offsets = [0, 0], sizes = [8, 384], strides = [1, 1]} : vector<8x512xf32> to vector<8x384xf32>
    %cst_65 = arith.constant 5.000000e-01 : f32
    %180 = vector.broadcast %cst_65 : f32 to vector<8x384xf32>
    %181 = arith.mulf %180, %179 : vector<8x384xf32>
    %182 = math.tanh %181 : vector<8x384xf32>
    %cst_66 = arith.constant 5.000000e-01 : f32
    %183 = vector.broadcast %cst_66 : f32 to vector<8x384xf32>
    %184 = arith.mulf %183, %182 : vector<8x384xf32>
    %cst_67 = arith.constant 5.000000e-01 : f32
    %185 = vector.broadcast %cst_67 : f32 to vector<8x384xf32>
    %186 = arith.addf %184, %185 : vector<8x384xf32>
    %187 = vector.extract_strided_slice %178 {offsets = [0, 384], sizes = [8, 128], strides = [1, 1]} : vector<8x512xf32> to vector<8x128xf32>
    %188 = math.tanh %187 : vector<8x128xf32>
    %189 = vector.extract_strided_slice %186 {offsets = [0, 0], sizes = [8, 128], strides = [1, 1]} : vector<8x384xf32> to vector<8x128xf32>
    %190 = vector.extract_strided_slice %186 {offsets = [0, 128], sizes = [8, 128], strides = [1, 1]} : vector<8x384xf32> to vector<8x128xf32>
    %191 = vector.extract_strided_slice %186 {offsets = [0, 256], sizes = [8, 128], strides = [1, 1]} : vector<8x384xf32> to vector<8x128xf32>
    %192 = arith.mulf %190, %170 : vector<8x128xf32>
    %193 = arith.mulf %189, %188 : vector<8x128xf32>
    %194 = arith.addf %192, %193 : vector<8x128xf32>
    %195 = math.tanh %194 : vector<8x128xf32>
    %196 = arith.mulf %191, %195 : vector<8x128xf32>
    %c8_i32 = arith.constant 8 : i32
    %c0_68 = arith.constant 0 : index
    %c0_69 = arith.constant 0 : index
    %197 = vector.load %arg6[%c0_68, %c0_69] : memref<8x128xf32, #tpu.memory_space<vmem>>, vector<8x128xf32>
    tpu.vector_store %arg6[%c0_68, %c0_69], %196 {strides = array<i32>} : memref<8x128xf32, #tpu.memory_space<vmem>>, vector<8x128xf32>,
    %c0_70 = arith.constant 0 : index
    %c0_71 = arith.constant 0 : index
    %198 = vector.load %arg7[%c0_70, %c0_71] : memref<8x128xf32, #tpu.memory_space<vmem>>, vector<8x128xf32>
    tpu.vector_store %arg7[%c0_70, %c0_71], %194 {strides = array<i32>} : memref<8x128xf32, #tpu.memory_space<vmem>>, vector<8x128xf32>,
    %c0_i32_72 = arith.constant 0 : i32
    %199 = arith.cmpi eq, %arg0, %c0_i32_72 : i32
    %200 = arith.extui %199 : i1 to i32
    %c0_i32_73 = arith.constant 0 : i32
    %201 = arith.cmpi ne, %200, %c0_i32_73 : i32
    scf.if %201 {
      %c0_74 = arith.constant 0 : index
      %c0_75 = arith.constant 0 : index
      %202 = vector.load %arg3[%c0_74, %c0_75] : memref<128x128xf32, #tpu.memory_space<vmem>>, vector<128x128xf32>
      %cst_76 = arith.constant dense<0.000000e+00> : vector<8x128xf32>
      %203 = tpu.matmul %196, %202, %cst_76 {dimension_numbers = #tpu.dot_dimension_numbers<[1], [0], [0], [1], [0, 0, 1, 1], [], []>} : vector<8x128xf32>, vector<128x128xf32>, vector<8x128xf32> -> vector<8x128xf32>
      %c0_77 = arith.constant 0 : index
      %c0_78 = arith.constant 0 : index
      %204 = vector.load %arg4[%c0_77, %c0_78] : memref<1x128xf32, #tpu.memory_space<vmem>>, vector<1x128xf32>
      %205 = vector.broadcast %204 : vector<1x128xf32> to vector<8x128xf32>
      %206 = arith.addf %203, %205 : vector<8x128xf32>
      %c0_79 = arith.constant 0 : index
      %c0_80 = arith.constant 0 : index
      %207 = vector.load %arg5[%c0_79, %c0_80] : memref<8x128xf32, #tpu.memory_space<vmem>>, vector<8x128xf32>
      tpu.vector_store %arg5[%c0_79, %c0_80], %206 {strides = array<i32>} : memref<8x128xf32, #tpu.memory_space<vmem>>, vector<8x128xf32>,
    } else {
    }
    return
  }
  func.func @transform_0(%arg0: i32) -> (i32, i32, i32) {
    %c0_i32 = arith.constant 0 : i32
    %c0_i32_0 = arith.constant 0 : i32
    %c0_i32_1 = arith.constant 0 : i32
    return %arg0, %c0_i32, %c0_i32_0 : i32, i32, i32
  }
  func.func @transform_1(%arg0: i32) -> (i32, i32) {
    %c0_i32 = arith.constant 0 : i32
    %c0_i32_0 = arith.constant 0 : i32
    %c0_i32_1 = arith.constant 0 : i32
    return %c0_i32, %c0_i32_0 : i32, i32
  }
  func.func @transform_2(%arg0: i32) -> (i32, i32) {
    %c0_i32 = arith.constant 0 : i32
    %c0_i32_0 = arith.constant 0 : i32
    %c0_i32_1 = arith.constant 0 : i32
    return %c0_i32, %c0_i32_0 : i32, i32
  }
  func.func @transform_3(%arg0: i32) -> (i32, i32) {
    %c0_i32 = arith.constant 0 : i32
    %c0_i32_0 = arith.constant 0 : i32
    %c0_i32_1 = arith.constant 0 : i32
    return %c0_i32, %c0_i32_0 : i32, i32
  }
  func.func @transform_4(%arg0: i32) -> (i32, i32) {
    %c0_i32 = arith.constant 0 : i32
    %c0_i32_0 = arith.constant 0 : i32
    %c0_i32_1 = arith.constant 0 : i32
    return %c0_i32, %c0_i32_0 : i32, i32
  }
}

</mosaic_0001>

<llo_original>
// kernel: lstm_model_forward.1
$region0: #{lstm_model_forward.1}
  #allocation0 [shape = 'u32[]', space=smem, size = 0x4, offset = 0x4, fixed_abs, tag = 'smem constant byte address 0x4 - core index']
  #allocation1 [shape = 'u32[144,128]{1,0:T(1,128)}', space=vmem, size = 0x12000, scoped, tag = 'internal scratch']
  #allocation2 [shape = 'f32[8,128]{1,0:T(8,128)}', space=vmem, size = 0x1000, scoped, tag = 'scratch operand']
  #allocation3 [shape = 'f32[8,128]{1,0:T(8,128)}', space=vmem, size = 0x1000, scoped, tag = 'scratch operand']
  %s0 = inlined_call_operand.vmem [shape: f32[8,8,512], index: 0, kind: input, shape index: {}]
  %s1 = inlined_call_operand.hbm [shape: f32[128,512], index: 1, kind: input, shape index: {}]
  %s2 = inlined_call_operand.vmem [shape: f32[128,128], index: 2, kind: input, shape index: {}]
  %s3 = inlined_call_operand.vmem [shape: f32[1,128], index: 3, kind: input, shape index: {}]
  %s4 = inlined_call_operand.vmem [shape: f32[8,128], index: 4, kind: output, shape index: {}]
  %s5 = sld [smem:[#allocation0]]
  $region38: #{lstm_model_forward.1} parent=0
    _
  %s7 = ssub.s32 1, %s5
  %s8 = scalar_select 0, %s7, %s5
  $region1: #{lstm_model_forward.1} parent=0
    #allocation4 [shape = 'u8[262144]{0}', space=vmem, size = 0x40000, scoped, tag = 'input window, operand 1, single buffered']
    #allocation5 [shape = 's32[1]{0}', space=sflag, size = 0x4, scoped, tag = 'scoped memory for lstm_model_forward.1']
    %9 = vsyncpa [#allocation5], 0
    // Predicated region
    $region2: #{lstm_model_forward.1} parent=1 // pred_check
      _
    $region3: #{lstm_model_forward.1} parent=1 // pred_check_branch
      %11 = sbr.rel (0) target = $region5
    $region4: #{lstm_model_forward.1} parent=1 // pred_region
      _
    $region5: #{lstm_model_forward.1} parent=1 // pred_fallthru
      _
    // Predicated region
    $region6: #{lstm_model_forward.1} parent=1 // pred_check
      _
    $region7: #{lstm_model_forward.1} parent=1 // pred_check_branch
      %13 = sbr.rel (0) target = $region9
    $region8: #{lstm_model_forward.1} parent=1 // pred_region
      %s15 = ssub.s32 8192, 8192
      %16 = vsyncadd [#allocation5], %s15
      %s17 = sshll.u32 [#allocation4], 4
      %s18 = int_to_ptr.vmem [resolvable:$true] %s17
      %23 = dma.hbm_to_vmem [thread:$0]  %s1, 8192, %s18, [#allocation5], 512, 512, 32
    $region9: #{lstm_model_forward.1} parent=1 // pred_fallthru
      _
    // Predicated region
    $region10: #{lstm_model_forward.1} parent=1 // pred_check
      _
    $region11: #{lstm_model_forward.1} parent=1 // pred_check_branch
      %25 = sbr.rel (0) target = $region13
    $region12: #{lstm_model_forward.1} parent=1 // pred_region
      _
    $region13: #{lstm_model_forward.1} parent=1 // pred_fallthru
      _
    // Predicated region
    $region14: #{lstm_model_forward.1} parent=1 // pred_check
      _
    $region15: #{lstm_model_forward.1} parent=1 // pred_check_branch
      %27 = sbr.rel (0) target = $region17
    $region16: #{lstm_model_forward.1} parent=1 // pred_region
      _
    $region17: #{lstm_model_forward.1} parent=1 // pred_fallthru
      _
    // Predicated region
    $region18: #{lstm_model_forward.1} parent=1 // pred_check
      _
    $region19: #{lstm_model_forward.1} parent=1 // pred_check_branch
      %29 = sbr.rel (0) target = $region21
    $region20: #{lstm_model_forward.1} parent=1 // pred_region
      %30 = dma.done [#allocation5], 8192
    $region21: #{lstm_model_forward.1} parent=1 // pred_fallthru
      _
    %p31 = scmp.eq.s32.totalorder 0, 0
    // Predicated region
    $region22: #{lstm_model_forward.1} parent=1 // pred_check
      %p32 = pneg %p31
    $region23: #{lstm_model_forward.1} parent=1 // pred_check_branch
      %34 = sbr.rel (%p32) target = $region25
    $region24: #{lstm_model_forward.1} parent=1 // pred_region
      %35 = vst [vmem:[#allocation2] sm:$0xff] 0.0
      %36 = vst [vmem:[#allocation3] sm:$0xff] 0.0
    $region25: #{lstm_model_forward.1} parent=1 // pred_fallthru
      _
    %v37 = vld [vmem:[#allocation2] sm:$0xff]
    %v38 = vld [vmem:[#allocation3] sm:$0xff]
    %v39 = vld [vmem:[#allocation4] sm:$0xff]
    %v40 = vld [vmem:[#allocation4 + $0x8] sm:$0xff]
    %v41 = vld [vmem:[#allocation4 + $0x10] sm:$0xff]
    %v42 = vld [vmem:[#allocation4 + $0x18] sm:$0xff]
    %v43 = vld [vmem:[#allocation4 + $0x20] sm:$0xff]
    %v44 = vld [vmem:[#allocation4 + $0x28] sm:$0xff]
    %v45 = vld [vmem:[#allocation4 + $0x30] sm:$0xff]
    %v46 = vld [vmem:[#allocation4 + $0x38] sm:$0xff]
    %v47 = vld [vmem:[#allocation4 + $0x40] sm:$0xff]
    %v48 = vld [vmem:[#allocation4 + $0x48] sm:$0xff]
    %v49 = vld [vmem:[#allocation4 + $0x50] sm:$0xff]
    %v50 = vld [vmem:[#allocation4 + $0x58] sm:$0xff]
    %v51 = vld [vmem:[#allocation4 + $0x60] sm:$0xff]
    %v52 = vld [vmem:[#allocation4 + $0x68] sm:$0xff]
    %v53 = vld [vmem:[#allocation4 + $0x70] sm:$0xff]
    %v54 = vld [vmem:[#allocation4 + $0x78] sm:$0xff]
    %v55 = vld [vmem:[#allocation4 + $0x80] sm:$0xff]
    %v56 = vld [vmem:[#allocation4 + $0x88] sm:$0xff]
    %v57 = vld [vmem:[#allocation4 + $0x90] sm:$0xff]
    %v58 = vld [vmem:[#allocation4 + $0x98] sm:$0xff]
    %v59 = vld [vmem:[#allocation4 + $0xa0] sm:$0xff]
    %v60 = vld [vmem:[#allocation4 + $0xa8] sm:$0xff]
    %v61 = vld [vmem:[#allocation4 + $0xb0] sm:$0xff]
    %v62 = vld [vmem:[#allocation4 + $0xb8] sm:$0xff]
    %v63 = vld [vmem:[#allocation4 + $0xc0] sm:$0xff]
    %v64 = vld [vmem:[#allocation4 + $0xc8] sm:$0xff]
    %v65 = vld [vmem:[#allocation4 + $0xd0] sm:$0xff]
    %v66 = vld [vmem:[#allocation4 + $0xd8] sm:$0xff]
    %v67 = vld [vmem:[#allocation4 + $0xe0] sm:$0xff]
    %v68 = vld [vmem:[#allocation4 + $0xe8] sm:$0xff]
    %v69 = vld [vmem:[#allocation4 + $0xf0] sm:$0xff]
    %v70 = vld [vmem:[#allocation4 + $0xf8] sm:$0xff]
    %v71 = vld [vmem:[#allocation4 + $0x100] sm:$0xff]
    %v72 = vld [vmem:[#allocation4 + $0x108] sm:$0xff]
    %v73 = vld [vmem:[#allocation4 + $0x110] sm:$0xff]
    %v74 = vld [vmem:[#allocation4 + $0x118] sm:$0xff]
    %v75 = vld [vmem:[#allocation4 + $0x120] sm:$0xff]
    %v76 = vld [vmem:[#allocation4 + $0x128] sm:$0xff]
    %v77 = vld [vmem:[#allocation4 + $0x130] sm:$0xff]
    %v78 = vld [vmem:[#allocation4 + $0x138] sm:$0xff]
    %v79 = vld [vmem:[#allocation4 + $0x140] sm:$0xff]
    %v80 = vld [vmem:[#allocation4 + $0x148] sm:$0xff]
    %v81 = vld [vmem:[#allocation4 + $0x150] sm:$0xff]
    %v82 = vld [vmem:[#allocation4 + $0x158] sm:$0xff]
    %v83 = vld [vmem:[#allocation4 + $0x160] sm:$0xff]
    %v84 = vld [vmem:[#allocation4 + $0x168] sm:$0xff]
    %v85 = vld [vmem:[#allocation4 + $0x170] sm:$0xff]
    %v86 = vld [vmem:[#allocation4 + $0x178] sm:$0xff]
    %v87 = vld [vmem:[#allocation4 + $0x180] sm:$0xff]
    %v88 = vld [vmem:[#allocation4 + $0x188] sm:$0xff]
    %v89 = vld [vmem:[#allocation4 + $0x190] sm:$0xff]
    %v90 = vld [vmem:[#allocation4 + $0x198] sm:$0xff]
    %v91 = vld [vmem:[#allocation4 + $0x1a0] sm:$0xff]
    %v92 = vld [vmem:[#allocation4 + $0x1a8] sm:$0xff]
    %v93 = vld [vmem:[#allocation4 + $0x1b0] sm:$0xff]
    %v94 = vld [vmem:[#allocation4 + $0x1b8] sm:$0xff]
    %v95 = vld [vmem:[#allocation4 + $0x1c0] sm:$0xff]
    %v96 = vld [vmem:[#allocation4 + $0x1c8] sm:$0xff]
    %v97 = vld [vmem:[#allocation4 + $0x1d0] sm:$0xff]
    %v98 = vld [vmem:[#allocation4 + $0x1d8] sm:$0xff]
    %v99 = vld [vmem:[#allocation4 + $0x1e0] sm:$0xff]
    %v100 = vld [vmem:[#allocation4 + $0x1e8] sm:$0xff]
    %v101 = vld [vmem:[#allocation4 + $0x1f0] sm:$0xff]
    %v102 = vld [vmem:[#allocation4 + $0x1f8] sm:$0xff]
    %v103 = vld [vmem:[%s0] sm:$0xff]
    %v104 = vld [vmem:[%s0 + $0x8] sm:$0xff]
    %v105 = vld [vmem:[%s0 + $0x10] sm:$0xff]
    %v106 = vld [vmem:[%s0 + $0x18] sm:$0xff]
    %107 = vmatprep.subr.mxu0 %v40
    %108 = vmatpush1.msra.mxu0 %v39
    %109 = vmatprep.subr.mxu0 %v44
    %110 = vmatpush1.msra.mxu0 %v43
    %111 = vmatprep.subr.mxu0 %v48
    %112 = vmatpush1.msra.mxu0 %v47
    %113 = vmatprep.subr.mxu0 %v52
    %114 = vmatpush1.msra.mxu0 %v51
    %115 = vmatprep.subr.mxu0 %v56
    %116 = vmatpush1.msra.mxu0 %v55
    %117 = vmatprep.subr.mxu0 %v60
    %118 = vmatpush1.msra.mxu0 %v59
    %119 = vmatprep.subr.mxu0 %v64
    %120 = vmatpush1.msra.mxu0 %v63
    %121 = vmatprep.subr.mxu0 %v68
    %122 = vmatpush1.msra.mxu0 %v67
    %123 = vmatprep.subr.mxu0 %v72
    %124 = vmatpush1.msra.mxu0 %v71
    %125 = vmatprep.subr.mxu0 %v76
    %126 = vmatpush1.msra.mxu0 %v75
    %127 = vmatprep.subr.mxu0 %v80
    %128 = vmatpush1.msra.mxu0 %v79
    %129 = vmatprep.subr.mxu0 %v84
    %130 = vmatpush1.msra.mxu0 %v83
    %131 = vmatprep.subr.mxu0 %v88
    %132 = vmatpush1.msra.mxu0 %v87
    %133 = vmatprep.subr.mxu0 %v92
    %134 = vmatpush1.msra.mxu0 %v91
    %135 = vmatprep.subr.mxu0 %v96
    %136 = vmatpush1.msra.mxu0 %v95
    %137 = vmatprep.subr.mxu0 %v100
    %138 = vmatpush1.msra.mxu0 %v99
    %139 = vmatprep.subr.mxu0 0.0
    %140 = vmatpush1.msra.mxu0 0.0
    %141 = vmatprep.subr.mxu0 0.0
    %142 = vmatpush1.msra.mxu0 0.0
    %143 = vmatprep.subr.mxu0 0.0
    %144 = vmatpush1.msra.mxu0 0.0
    %145 = vmatprep.subr.mxu0 0.0
    %146 = vmatpush1.msra.mxu0 0.0
    %147 = vmatprep.subr.mxu0 0.0
    %148 = vmatpush1.msra.mxu0 0.0
    %149 = vmatprep.subr.mxu0 0.0
    %150 = vmatpush1.msra.mxu0 0.0
    %151 = vmatprep.subr.mxu0 0.0
    %152 = vmatpush1.msra.mxu0 0.0
    %153 = vmatprep.subr.mxu0 0.0
    %154 = vmatpush1.msra.mxu0 0.0
    %155 = vmatprep.subr.mxu0 0.0
    %156 = vmatpush1.msra.mxu0 0.0
    %157 = vmatprep.subr.mxu0 0.0
    %158 = vmatpush1.msra.mxu0 0.0
    %159 = vmatprep.subr.mxu0 0.0
    %160 = vmatpush1.msra.mxu0 0.0
    %161 = vmatprep.subr.mxu0 0.0
    %162 = vmatpush1.msra.mxu0 0.0
    %163 = vmatprep.subr.mxu0 0.0
    %164 = vmatpush1.msra.mxu0 0.0
    %165 = vmatprep.subr.mxu0 0.0
    %166 = vmatpush1.msra.mxu0 0.0
    %167 = vmatprep.subr.mxu0 0.0
    %168 = vmatpush1.msra.mxu0 0.0
    %169 = vmatprep.subr.mxu0 0.0
    %170 = vmatpush1.msra.mxu0 0.0
    %171 = vmatprep.mubr.f32.mxu0 0.0
    %172 = vmatmul.mubr.f32.gmra.mrb[0].mxu0 %v37
    %v173 = vpop.f32.mrb[0].mxu0
    %v174 = vadd.f32 0.0, %v173
    %v175 = vpop.f32.mrb[0].mxu0
    %v176 = vadd.f32 0.0, %v175
    %177 = vdwg.mxu0
    %178 = vmatprep.subr.mxu0 %v42
    %179 = vmatpush1.msra.mxu0 %v41
    %180 = vmatprep.subr.mxu0 %v46
    %181 = vmatpush1.msra.mxu0 %v45
    %182 = vmatprep.subr.mxu0 %v50
    %183 = vmatpush1.msra.mxu0 %v49
    %184 = vmatprep.subr.mxu0 %v54
    %185 = vmatpush1.msra.mxu0 %v53
    %186 = vmatprep.subr.mxu0 %v58
    %187 = vmatpush1.msra.mxu0 %v57
    %188 = vmatprep.subr.mxu0 %v62
    %189 = vmatpush1.msra.mxu0 %v61
    %190 = vmatprep.subr.mxu0 %v66
    %191 = vmatpush1.msra.mxu0 %v65
    %192 = vmatprep.subr.mxu0 %v70
    %193 = vmatpush1.msra.mxu0 %v69
    %194 = vmatprep.subr.mxu0 %v74
    %195 = vmatpush1.msra.mxu0 %v73
    %196 = vmatprep.subr.mxu0 %v78
    %197 = vmatpush1.msra.mxu0 %v77
    %198 = vmatprep.subr.mxu0 %v82
    %199 = vmatpush1.msra.mxu0 %v81
    %200 = vmatprep.subr.mxu0 %v86
    %201 = vmatpush1.msra.mxu0 %v85
    %202 = vmatprep.subr.mxu0 %v90
    %203 = vmatpush1.msra.mxu0 %v89
    %204 = vmatprep.subr.mxu0 %v94
    %205 = vmatpush1.msra.mxu0 %v93
    %206 = vmatprep.subr.mxu0 %v98
    %207 = vmatpush1.msra.mxu0 %v97
    %208 = vmatprep.subr.mxu0 %v102
    %209 = vmatpush1.msra.mxu0 %v101
    %210 = vmatprep.subr.mxu0 0.0
    %211 = vmatpush1.msra.mxu0 0.0
    %212 = vmatprep.subr.mxu0 0.0
    %213 = vmatpush1.msra.mxu0 0.0
    %214 = vmatprep.subr.mxu0 0.0
    %215 = vmatpush1.msra.mxu0 0.0
    %216 = vmatprep.subr.mxu0 0.0
    %217 = vmatpush1.msra.mxu0 0.0
    %218 = vmatprep.subr.mxu0 0.0
    %219 = vmatpush1.msra.mxu0 0.0
    %220 = vmatprep.subr.mxu0 0.0
    %221 = vmatpush1.msra.mxu0 0.0
    %222 = vmatprep.subr.mxu0 0.0
    %223 = vmatpush1.msra.mxu0 0.0
    %224 = vmatprep.subr.mxu0 0.0
    %225 = vmatpush1.msra.mxu0 0.0
    %226 = vmatprep.subr.mxu0 0.0
    %227 = vmatpush1.msra.mxu0 0.0
    %228 = vmatprep.subr.mxu0 0.0
    %229 = vmatpush1.msra.mxu0 0.0
    %230 = vmatprep.subr.mxu0 0.0
    %231 = vmatpush1.msra.mxu0 0.0
    %232 = vmatprep.subr.mxu0 0.0
    %233 = vmatpush1.msra.mxu0 0.0
    %234 = vmatprep.subr.mxu0 0.0
    %235 = vmatpush1.msra.mxu0 0.0
    %236 = vmatprep.subr.mxu0 0.0
    %237 = vmatpush1.msra.mxu0 0.0
    %238 = vmatprep.subr.mxu0 0.0
    %239 = vmatpush1.msra.mxu0 0.0
    %240 = vmatprep.subr.mxu0 0.0
    %241 = vmatpush1.msra.mxu0 0.0
    %242 = vmatprep.mubr.f32.mxu0 0.0
    %243 = vmatmul.mubr.f32.gmra.mrb[0].mxu0 %v37
    %v244 = vpop.f32.mrb[0].mxu0
    %v245 = vadd.f32 0.0, %v244
    %v246 = vpop.f32.mrb[0].mxu0
    %v247 = vadd.f32 0.0, %v246
    %248 = vdwg.mxu0
    %v249 = vadd.f32 %v103, %v174
    %v250 = vadd.f32 %v104, %v176
    %v251 = vadd.f32 %v105, %v245
    %v252 = vadd.f32 %v106, %v247
    %v253 = vmul.f32 %v249, 0.5
    %v254 = vmul.f32 %v250, 0.5
    %v255 = vmul.f32 %v251, 0.5
    %v256 = vtanh.pop %v253
    %v257 = vtanh.pop %v254
    %v258 = vtanh.pop %v255
    %v259 = vmul.f32 %v256, 0.5
    %v260 = vmul.f32 %v257, 0.5
    %v261 = vmul.f32 %v258, 0.5
    %v262 = vadd.f32 %v259, 0.5
    %v263 = vadd.f32 %v260, 0.5
    %v264 = vadd.f32 %v261, 0.5
    %v265 = vtanh.pop %v252
    %v266 = vmul.f32 %v263, %v38
    %v267 = vmul.f32 %v262, %v265
    %v268 = vadd.f32 %v266, %v267
    %v269 = vtanh.pop %v268
    %v270 = vmul.f32 %v264, %v269
    %s271 = scalar_lea.vmem %s0, 32
    %v272 = vld [vmem:[%s271] sm:$0xff]
    %v273 = vld [vmem:[%s271 + $0x8] sm:$0xff]
    %v274 = vld [vmem:[%s271 + $0x10] sm:$0xff]
    %v275 = vld [vmem:[%s271 + $0x18] sm:$0xff]
    %276 = vmatprep.subr.mxu0 %v40
    %277 = vmatpush1.msra.mxu0 %v39
    %278 = vmatprep.subr.mxu0 %v44
    %279 = vmatpush1.msra.mxu0 %v43
    %280 = vmatprep.subr.mxu0 %v48
    %281 = vmatpush1.msra.mxu0 %v47
    %282 = vmatprep.subr.mxu0 %v52
    %283 = vmatpush1.msra.mxu0 %v51
    %284 = vmatprep.subr.mxu0 %v56
    %285 = vmatpush1.msra.mxu0 %v55
    %286 = vmatprep.subr.mxu0 %v60
    %287 = vmatpush1.msra.mxu0 %v59
    %288 = vmatprep.subr.mxu0 %v64
    %289 = vmatpush1.msra.mxu0 %v63
    %290 = vmatprep.subr.mxu0 %v68
    %291 = vmatpush1.msra.mxu0 %v67
    %292 = vmatprep.subr.mxu0 %v72
    %293 = vmatpush1.msra.mxu0 %v71
    %294 = vmatprep.subr.mxu0 %v76
    %295 = vmatpush1.msra.mxu0 %v75
    %296 = vmatprep.subr.mxu0 %v80
    %297 = vmatpush1.msra.mxu0 %v79
    %298 = vmatprep.subr.mxu0 %v84
    %299 = vmatpush1.msra.mxu0 %v83
    %300 = vmatprep.subr.mxu0 %v88
    %301 = vmatpush1.msra.mxu0 %v87
    %302 = vmatprep.subr.mxu0 %v92
    %303 = vmatpush1.msra.mxu0 %v91
    %304 = vmatprep.subr.mxu0 %v96
    %305 = vmatpush1.msra.mxu0 %v95
    %306 = vmatprep.subr.mxu0 %v100
    %307 = vmatpush1.msra.mxu0 %v99
    %308 = vmatprep.subr.mxu0 0.0
    %309 = vmatpush1.msra.mxu0 0.0
    %310 = vmatprep.subr.mxu0 0.0
    %311 = vmatpush1.msra.mxu0 0.0
    %312 = vmatprep.subr.mxu0 0.0
    %313 = vmatpush1.msra.mxu0 0.0
    %314 = vmatprep.subr.mxu0 0.0
    %315 = vmatpush1.msra.mxu0 0.0
    %316 = vmatprep.subr.mxu0 0.0
    %317 = vmatpush1.msra.mxu0 0.0
    %318 = vmatprep.subr.mxu0 0.0
    %319 = vmatpush1.msra.mxu0 0.0
    %320 = vmatprep.subr.mxu0 0.0
    %321 = vmatpush1.msra.mxu0 0.0
    %322 = vmatprep.subr.mxu0 0.0
    %323 = vmatpush1.msra.mxu0 0.0
    %324 = vmatprep.subr.mxu0 0.0
    %325 = vmatpush1.msra.mxu0 0.0
    %326 = vmatprep.subr.mxu0 0.0
    %327 = vmatpush1.msra.mxu0 0.0
    %328 = vmatprep.subr.mxu0 0.0
    %329 = vmatpush1.msra.mxu0 0.0
    %330 = vmatprep.subr.mxu0 0.0
    %331 = vmatpush1.msra.mxu0 0.0
    %332 = vmatprep.subr.mxu0 0.0
    %333 = vmatpush1.msra.mxu0 0.0
    %334 = vmatprep.subr.mxu0 0.0
    %335 = vmatpush1.msra.mxu0 0.0
    %336 = vmatprep.subr.mxu0 0.0
    %337 = vmatpush1.msra.mxu0 0.0
    %338 = vmatprep.subr.mxu0 0.0
    %339 = vmatpush1.msra.mxu0 0.0
    %340 = vmatprep.mubr.f32.mxu0 0.0
    %341 = vmatmul.mubr.f32.gmra.mrb[0].mxu0 %v270
    %v342 = vpop.f32.mrb[0].mxu0
    %v343 = vadd.f32 0.0, %v342
    %v344 = vpop.f32.mrb[0].mxu0
    %v345 = vadd.f32 0.0, %v344
    %346 = vdwg.mxu0
    %347 = vmatprep.subr.mxu0 %v42
    %348 = vmatpush1.msra.mxu0 %v41
    %349 = vmatprep.subr.mxu0 %v46
    %350 = vmatpush1.msra.mxu0 %v45
    %351 = vmatprep.subr.mxu0 %v50
    %352 = vmatpush1.msra.mxu0 %v49
    %353 = vmatprep.subr.mxu0 %v54
    %354 = vmatpush1.msra.mxu0 %v53
    %355 = vmatprep.subr.mxu0 %v58
    %356 = vmatpush1.msra.mxu0 %v57
    %357 = vmatprep.subr.mxu0 %v62
    %358 = vmatpush1.msra.mxu0 %v61
    %359 = vmatprep.subr.mxu0 %v66
    %360 = vmatpush1.msra.mxu0 %v65
    %361 = vmatprep.subr.mxu0 %v70
    %362 = vmatpush1.msra.mxu0 %v69
    %363 = vmatprep.subr.mxu0 %v74
    %364 = vmatpush1.msra.mxu0 %v73
    %365 = vmatprep.subr.mxu0 %v78
    %366 = vmatpush1.msra.mxu0 %v77
    %367 = vmatprep.subr.mxu0 %v82
    %368 = vmatpush1.msra.mxu0 %v81
    %369 = vmatprep.subr.mxu0 %v86
    %370 = vmatpush1.msra.mxu0 %v85
    %371 = vmatprep.subr.mxu0 %v90
    %372 = vmatpush1.msra.mxu0 %v89
    %373 = vmatprep.subr.mxu0 %v94
    %374 = vmatpush1.msra.mxu0 %v93
    %375 = vmatprep.subr.mxu0 %v98
    %376 = vmatpush1.msra.mxu0 %v97
    %377 = vmatprep.subr.mxu0 %v102
    %378 = vmatpush1.msra.mxu0 %v101
    %379 = vmatprep.subr.mxu0 0.0
    %380 = vmatpush1.msra.mxu0 0.0
    %381 = vmatprep.subr.mxu0 0.0
    %382 = vmatpush1.msra.mxu0 0.0
    %383 = vmatprep.subr.mxu0 0.0
    %384 = vmatpush1.msra.mxu0 0.0
    %385 = vmatprep.subr.mxu0 0.0
    %386 = vmatpush1.msra.mxu0 0.0
    %387 = vmatprep.subr.mxu0 0.0
    %388 = vmatpush1.msra.mxu0 0.0
    %389 = vmatprep.subr.mxu0 0.0
    %390 = vmatpush1.msra.mxu0 0.0
    %391 = vmatprep.subr.mxu0 0.0
    %392 = vmatpush1.msra.mxu0 0.0
    %393 = vmatprep.subr.mxu0 0.0
    %394 = vmatpush1.msra.mxu0 0.0
    %395 = vmatprep.subr.mxu0 0.0
    %396 = vmatpush1.msra.mxu0 0.0
    %397 = vmatprep.subr.mxu0 0.0
    %398 = vmatpush1.msra.mxu0 0.0
    %399 = vmatprep.subr.mxu0 0.0
    %400 = vmatpush1.msra.mxu0 0.0
    %401 = vmatprep.subr.mxu0 0.0
    %402 = vmatpush1.msra.mxu0 0.0
    %403 = vmatprep.subr.mxu0 0.0
    %404 = vmatpush1.msra.mxu0 0.0
    %405 = vmatprep.subr.mxu0 0.0
    %406 = vmatpush1.msra.mxu0 0.0
    %407 = vmatprep.subr.mxu0 0.0
    %408 = vmatpush1.msra.mxu0 0.0
    %409 = vmatprep.subr.mxu0 0.0
    %410 = vmatpush1.msra.mxu0 0.0
    %411 = vmatprep.mubr.f32.mxu0 0.0
    %412 = vmatmul.mubr.f32.gmra.mrb[0].mxu0 %v270
    %v413 = vpop.f32.mrb[0].mxu0
    %v414 = vadd.f32 0.0, %v413
    %v415 = vpop.f32.mrb[0].mxu0
    %v416 = vadd.f32 0.0, %v415
    %417 = vdwg.mxu0
    %v418 = vadd.f32 %v272, %v343
    %v419 = vadd.f32 %v273, %v345
    %v420 = vadd.f32 %v274, %v414
    %v421 = vadd.f32 %v275, %v416
    %v422 = vmul.f32 %v418, 0.5
    %v423 = vmul.f32 %v419, 0.5
    %v424 = vmul.f32 %v420, 0.5
    %v425 = vtanh.pop %v422
    %v426 = vtanh.pop %v423
    %v427 = vtanh.pop %v424
    %v428 = vmul.f32 %v425, 0.5
    %v429 = vmul.f32 %v426, 0.5
    %v430 = vmul.f32 %v427, 0.5
    %v431 = vadd.f32 %v428, 0.5
    %v432 = vadd.f32 %v429, 0.5
    %v433 = vadd.f32 %v430, 0.5
    %v434 = vtanh.pop %v421
    %v435 = vmul.f32 %v432, %v268
    %v436 = vmul.f32 %v431, %v434
    %v437 = vadd.f32 %v435, %v436
    %v438 = vtanh.pop %v437
    %v439 = vmul.f32 %v433, %v438
    %s440 = scalar_lea.vmem %s0, 64
    %v441 = vld [vmem:[%s440] sm:$0xff]
    %v442 = vld [vmem:[%s440 + $0x8] sm:$0xff]
    %v443 = vld [vmem:[%s440 + $0x10] sm:$0xff]
    %v444 = vld [vmem:[%s440 + $0x18] sm:$0xff]
    %445 = vmatprep.subr.mxu0 %v40
    %446 = vmatpush1.msra.mxu0 %v39
    %447 = vmatprep.subr.mxu0 %v44
    %448 = vmatpush1.msra.mxu0 %v43
    %449 = vmatprep.subr.mxu0 %v48
    %450 = vmatpush1.msra.mxu0 %v47
    %451 = vmatprep.subr.mxu0 %v52
    %452 = vmatpush1.msra.mxu0 %v51
    %453 = vmatprep.subr.mxu0 %v56
    %454 = vmatpush1.msra.mxu0 %v55
    %455 = vmatprep.subr.mxu0 %v60
    %456 = vmatpush1.msra.mxu0 %v59
    %457 = vmatprep.subr.mxu0 %v64
    %458 = vmatpush1.msra.mxu0 %v63
    %459 = vmatprep.subr.mxu0 %v68
    %460 = vmatpush1.msra.mxu0 %v67
    %461 = vmatprep.subr.mxu0 %v72
    %462 = vmatpush1.msra.mxu0 %v71
    %463 = vmatprep.subr.mxu0 %v76
    %464 = vmatpush1.msra.mxu0 %v75
    %465 = vmatprep.subr.mxu0 %v80
    %466 = vmatpush1.msra.mxu0 %v79
    %467 = vmatprep.subr.mxu0 %v84
    %468 = vmatpush1.msra.mxu0 %v83
    %469 = vmatprep.subr.mxu0 %v88
    %470 = vmatpush1.msra.mxu0 %v87
    %471 = vmatprep.subr.mxu0 %v92
    %472 = vmatpush1.msra.mxu0 %v91
    %473 = vmatprep.subr.mxu0 %v96
    %474 = vmatpush1.msra.mxu0 %v95
    %475 = vmatprep.subr.mxu0 %v100
    %476 = vmatpush1.msra.mxu0 %v99
    %477 = vmatprep.subr.mxu0 0.0
    %478 = vmatpush1.msra.mxu0 0.0
    %479 = vmatprep.subr.mxu0 0.0
    %480 = vmatpush1.msra.mxu0 0.0
    %481 = vmatprep.subr.mxu0 0.0
    %482 = vmatpush1.msra.mxu0 0.0
    %483 = vmatprep.subr.mxu0 0.0
    %484 = vmatpush1.msra.mxu0 0.0
    %485 = vmatprep.subr.mxu0 0.0
    %486 = vmatpush1.msra.mxu0 0.0
    %487 = vmatprep.subr.mxu0 0.0
    %488 = vmatpush1.msra.mxu0 0.0
    %489 = vmatprep.subr.mxu0 0.0
    %490 = vmatpush1.msra.mxu0 0.0
    %491 = vmatprep.subr.mxu0 0.0
    %492 = vmatpush1.msra.mxu0 0.0
    %493 = vmatprep.subr.mxu0 0.0
    %494 = vmatpush1.msra.mxu0 0.0
    %495 = vmatprep.subr.mxu0 0.0
    %496 = vmatpush1.msra.mxu0 0.0
    %497 = vmatprep.subr.mxu0 0.0
    %498 = vmatpush1.msra.mxu0 0.0
    %499 = vmatprep.subr.mxu0 0.0
    %500 = vmatpush1.msra.mxu0 0.0
    %501 = vmatprep.subr.mxu0 0.0
    %502 = vmatpush1.msra.mxu0 0.0
    %503 = vmatprep.subr.mxu0 0.0
    %504 = vmatpush1.msra.mxu0 0.0
    %505 = vmatprep.subr.mxu0 0.0
    %506 = vmatpush1.msra.mxu0 0.0
    %507 = vmatprep.subr.mxu0 0.0
    %508 = vmatpush1.msra.mxu0 0.0
    %509 = vmatprep.mubr.f32.mxu0 0.0
    %510 = vmatmul.mubr.f32.gmra.mrb[0].mxu0 %v439
    %v511 = vpop.f32.mrb[0].mxu0
    %v512 = vadd.f32 0.0, %v511
    %v513 = vpop.f32.mrb[0].mxu0
    %v514 = vadd.f32 0.0, %v513
    %515 = vdwg.mxu0
    %516 = vmatprep.subr.mxu0 %v42
    %517 = vmatpush1.msra.mxu0 %v41
    %518 = vmatprep.subr.mxu0 %v46
    %519 = vmatpush1.msra.mxu0 %v45
    %520 = vmatprep.subr.mxu0 %v50
    %521 = vmatpush1.msra.mxu0 %v49
    %522 = vmatprep.subr.mxu0 %v54
    %523 = vmatpush1.msra.mxu0 %v53
    %524 = vmatprep.subr.mxu0 %v58
    %525 = vmatpush1.msra.mxu0 %v57
    %526 = vmatprep.subr.mxu0 %v62
    %527 = vmatpush1.msra.mxu0 %v61
    %528 = vmatprep.subr.mxu0 %v66
    %529 = vmatpush1.msra.mxu0 %v65
    %530 = vmatprep.subr.mxu0 %v70
    %531 = vmatpush1.msra.mxu0 %v69
    %532 = vmatprep.subr.mxu0 %v74
    %533 = vmatpush1.msra.mxu0 %v73
    %534 = vmatprep.subr.mxu0 %v78
    %535 = vmatpush1.msra.mxu0 %v77
    %536 = vmatprep.subr.mxu0 %v82
    %537 = vmatpush1.msra.mxu0 %v81
    %538 = vmatprep.subr.mxu0 %v86
    %539 = vmatpush1.msra.mxu0 %v85
    %540 = vmatprep.subr.mxu0 %v90
    %541 = vmatpush1.msra.mxu0 %v89
    %542 = vmatprep.subr.mxu0 %v94
    %543 = vmatpush1.msra.mxu0 %v93
    %544 = vmatprep.subr.mxu0 %v98
    %545 = vmatpush1.msra.mxu0 %v97
    %546 = vmatprep.subr.mxu0 %v102
    %547 = vmatpush1.msra.mxu0 %v101
    %548 = vmatprep.subr.mxu0 0.0
    %549 = vmatpush1.msra.mxu0 0.0
    %550 = vmatprep.subr.mxu0 0.0
    %551 = vmatpush1.msra.mxu0 0.0
    %552 = vmatprep.subr.mxu0 0.0
    %553 = vmatpush1.msra.mxu0 0.0
    %554 = vmatprep.subr.mxu0 0.0
    %555 = vmatpush1.msra.mxu0 0.0
    %556 = vmatprep.subr.mxu0 0.0
    %557 = vmatpush1.msra.mxu0 0.0
    %558 = vmatprep.subr.mxu0 0.0
    %559 = vmatpush1.msra.mxu0 0.0
    %560 = vmatprep.subr.mxu0 0.0
    %561 = vmatpush1.msra.mxu0 0.0
    %562 = vmatprep.subr.mxu0 0.0
    %563 = vmatpush1.msra.mxu0 0.0
    %564 = vmatprep.subr.mxu0 0.0
    %565 = vmatpush1.msra.mxu0 0.0
    %566 = vmatprep.subr.mxu0 0.0
    %567 = vmatpush1.msra.mxu0 0.0
    %568 = vmatprep.subr.mxu0 0.0
    %569 = vmatpush1.msra.mxu0 0.0
    %570 = vmatprep.subr.mxu0 0.0
    %571 = vmatpush1.msra.mxu0 0.0
    %572 = vmatprep.subr.mxu0 0.0
    %573 = vmatpush1.msra.mxu0 0.0
    %574 = vmatprep.subr.mxu0 0.0
    %575 = vmatpush1.msra.mxu0 0.0
    %576 = vmatprep.subr.mxu0 0.0
    %577 = vmatpush1.msra.mxu0 0.0
    %578 = vmatprep.subr.mxu0 0.0
    %579 = vmatpush1.msra.mxu0 0.0
    %580 = vmatprep.mubr.f32.mxu0 0.0
    %581 = vmatmul.mubr.f32.gmra.mrb[0].mxu0 %v439
    %v582 = vpop.f32.mrb[0].mxu0
    %v583 = vadd.f32 0.0, %v582
    %v584 = vpop.f32.mrb[0].mxu0
    %v585 = vadd.f32 0.0, %v584
    %586 = vdwg.mxu0
    %v587 = vadd.f32 %v441, %v512
    %v588 = vadd.f32 %v442, %v514
    %v589 = vadd.f32 %v443, %v583
    %v590 = vadd.f32 %v444, %v585
    %v591 = vmul.f32 %v587, 0.5
    %v592 = vmul.f32 %v588, 0.5
    %v593 = vmul.f32 %v589, 0.5
    %v594 = vtanh.pop %v591
    %v595 = vtanh.pop %v592
    %v596 = vtanh.pop %v593
    %v597 = vmul.f32 %v594, 0.5
    %v598 = vmul.f32 %v595, 0.5
    %v599 = vmul.f32 %v596, 0.5
    %v600 = vadd.f32 %v597, 0.5
    %v601 = vadd.f32 %v598, 0.5
    %v602 = vadd.f32 %v599, 0.5
    %v603 = vtanh.pop %v590
    %v604 = vmul.f32 %v601, %v437
    %v605 = vmul.f32 %v600, %v603
    %v606 = vadd.f32 %v604, %v605
    %v607 = vtanh.pop %v606
    %v608 = vmul.f32 %v602, %v607
    %s609 = scalar_lea.vmem %s0, 96
    %v610 = vld [vmem:[%s609] sm:$0xff]
    %v611 = vld [vmem:[%s609 + $0x8] sm:$0xff]
    %v612 = vld [vmem:[%s609 + $0x10] sm:$0xff]
    %v613 = vld [vmem:[%s609 + $0x18] sm:$0xff]
    %614 = vmatprep.subr.mxu0 %v40
    %615 = vmatpush1.msra.mxu0 %v39
    %616 = vmatprep.subr.mxu0 %v44
    %617 = vmatpush1.msra.mxu0 %v43
    %618 = vmatprep.subr.mxu0 %v48
    %619 = vmatpush1.msra.mxu0 %v47
    %620 = vmatprep.subr.mxu0 %v52
    %621 = vmatpush1.msra.mxu0 %v51
    %622 = vmatprep.subr.mxu0 %v56
    %623 = vmatpush1.msra.mxu0 %v55
    %624 = vmatprep.subr.mxu0 %v60
    %625 = vmatpush1.msra.mxu0 %v59
    %626 = vmatprep.subr.mxu0 %v64
    %627 = vmatpush1.msra.mxu0 %v63
    %628 = vmatprep.subr.mxu0 %v68
    %629 = vmatpush1.msra.mxu0 %v67
    %630 = vmatprep.subr.mxu0 %v72
    %631 = vmatpush1.msra.mxu0 %v71
    %632 = vmatprep.subr.mxu0 %v76
    %633 = vmatpush1.msra.mxu0 %v75
    %634 = vmatprep.subr.mxu0 %v80
    %635 = vmatpush1.msra.mxu0 %v79
    %636 = vmatprep.subr.mxu0 %v84
    %637 = vmatpush1.msra.mxu0 %v83
    %638 = vmatprep.subr.mxu0 %v88
    %639 = vmatpush1.msra.mxu0 %v87
    %640 = vmatprep.subr.mxu0 %v92
    %641 = vmatpush1.msra.mxu0 %v91
    %642 = vmatprep.subr.mxu0 %v96
    %643 = vmatpush1.msra.mxu0 %v95
    %644 = vmatprep.subr.mxu0 %v100
    %645 = vmatpush1.msra.mxu0 %v99
    %646 = vmatprep.subr.mxu0 0.0
    %647 = vmatpush1.msra.mxu0 0.0
    %648 = vmatprep.subr.mxu0 0.0
    %649 = vmatpush1.msra.mxu0 0.0
    %650 = vmatprep.subr.mxu0 0.0
    %651 = vmatpush1.msra.mxu0 0.0
    %652 = vmatprep.subr.mxu0 0.0
    %653 = vmatpush1.msra.mxu0 0.0
    %654 = vmatprep.subr.mxu0 0.0
    %655 = vmatpush1.msra.mxu0 0.0
    %656 = vmatprep.subr.mxu0 0.0
    %657 = vmatpush1.msra.mxu0 0.0
    %658 = vmatprep.subr.mxu0 0.0
    %659 = vmatpush1.msra.mxu0 0.0
    %660 = vmatprep.subr.mxu0 0.0
    %661 = vmatpush1.msra.mxu0 0.0
    %662 = vmatprep.subr.mxu0 0.0
    %663 = vmatpush1.msra.mxu0 0.0
    %664 = vmatprep.subr.mxu0 0.0
    %665 = vmatpush1.msra.mxu0 0.0
    %666 = vmatprep.subr.mxu0 0.0
    %667 = vmatpush1.msra.mxu0 0.0
    %668 = vmatprep.subr.mxu0 0.0
    %669 = vmatpush1.msra.mxu0 0.0
    %670 = vmatprep.subr.mxu0 0.0
    %671 = vmatpush1.msra.mxu0 0.0
    %672 = vmatprep.subr.mxu0 0.0
    %673 = vmatpush1.msra.mxu0 0.0
    %674 = vmatprep.subr.mxu0 0.0
    %675 = vmatpush1.msra.mxu0 0.0
    %676 = vmatprep.subr.mxu0 0.0
    %677 = vmatpush1.msra.mxu0 0.0
    %678 = vmatprep.mubr.f32.mxu0 0.0
    %679 = vmatmul.mubr.f32.gmra.mrb[0].mxu0 %v608
    %v680 = vpop.f32.mrb[0].mxu0
    %v681 = vadd.f32 0.0, %v680
    %v682 = vpop.f32.mrb[0].mxu0
    %v683 = vadd.f32 0.0, %v682
    %684 = vdwg.mxu0
    %685 = vmatprep.subr.mxu0 %v42
    %686 = vmatpush1.msra.mxu0 %v41
    %687 = vmatprep.subr.mxu0 %v46
    %688 = vmatpush1.msra.mxu0 %v45
    %689 = vmatprep.subr.mxu0 %v50
    %690 = vmatpush1.msra.mxu0 %v49
    %691 = vmatprep.subr.mxu0 %v54
    %692 = vmatpush1.msra.mxu0 %v53
    %693 = vmatprep.subr.mxu0 %v58
    %694 = vmatpush1.msra.mxu0 %v57
    %695 = vmatprep.subr.mxu0 %v62
    %696 = vmatpush1.msra.mxu0 %v61
    %697 = vmatprep.subr.mxu0 %v66
    %698 = vmatpush1.msra.mxu0 %v65
    %699 = vmatprep.subr.mxu0 %v70
    %700 = vmatpush1.msra.mxu0 %v69
    %701 = vmatprep.subr.mxu0 %v74
    %702 = vmatpush1.msra.mxu0 %v73
    %703 = vmatprep.subr.mxu0 %v78
    %704 = vmatpush1.msra.mxu0 %v77
    %705 = vmatprep.subr.mxu0 %v82
    %706 = vmatpush1.msra.mxu0 %v81
    %707 = vmatprep.subr.mxu0 %v86
    %708 = vmatpush1.msra.mxu0 %v85
    %709 = vmatprep.subr.mxu0 %v90
    %710 = vmatpush1.msra.mxu0 %v89
    %711 = vmatprep.subr.mxu0 %v94
    %712 = vmatpush1.msra.mxu0 %v93
    %713 = vmatprep.subr.mxu0 %v98
    %714 = vmatpush1.msra.mxu0 %v97
    %715 = vmatprep.subr.mxu0 %v102
    %716 = vmatpush1.msra.mxu0 %v101
    %717 = vmatprep.subr.mxu0 0.0
    %718 = vmatpush1.msra.mxu0 0.0
    %719 = vmatprep.subr.mxu0 0.0
    %720 = vmatpush1.msra.mxu0 0.0
    %721 = vmatprep.subr.mxu0 0.0
    %722 = vmatpush1.msra.mxu0 0.0
    %723 = vmatprep.subr.mxu0 0.0
    %724 = vmatpush1.msra.mxu0 0.0
    %725 = vmatprep.subr.mxu0 0.0
    %726 = vmatpush1.msra.mxu0 0.0
    %727 = vmatprep.subr.mxu0 0.0
    %728 = vmatpush1.msra.mxu0 0.0
    %729 = vmatprep.subr.mxu0 0.0
    %730 = vmatpush1.msra.mxu0 0.0
    %731 = vmatprep.subr.mxu0 0.0
    %732 = vmatpush1.msra.mxu0 0.0
    %733 = vmatprep.subr.mxu0 0.0
    %734 = vmatpush1.msra.mxu0 0.0
    %735 = vmatprep.subr.mxu0 0.0
    %736 = vmatpush1.msra.mxu0 0.0
    %737 = vmatprep.subr.mxu0 0.0
    %738 = vmatpush1.msra.mxu0 0.0
    %739 = vmatprep.subr.mxu0 0.0
    %740 = vmatpush1.msra.mxu0 0.0
    %741 = vmatprep.subr.mxu0 0.0
    %742 = vmatpush1.msra.mxu0 0.0
    %743 = vmatprep.subr.mxu0 0.0
    %744 = vmatpush1.msra.mxu0 0.0
    %745 = vmatprep.subr.mxu0 0.0
    %746 = vmatpush1.msra.mxu0 0.0
    %747 = vmatprep.subr.mxu0 0.0
    %748 = vmatpush1.msra.mxu0 0.0
    %749 = vmatprep.mubr.f32.mxu0 0.0
    %750 = vmatmul.mubr.f32.gmra.mrb[0].mxu0 %v608
    %v751 = vpop.f32.mrb[0].mxu0
    %v752 = vadd.f32 0.0, %v751
    %v753 = vpop.f32.mrb[0].mxu0
    %v754 = vadd.f32 0.0, %v753
    %755 = vdwg.mxu0
    %v756 = vadd.f32 %v610, %v681
    %v757 = vadd.f32 %v611, %v683
    %v758 = vadd.f32 %v612, %v752
    %v759 = vadd.f32 %v613, %v754
    %v760 = vmul.f32 %v756, 0.5
    %v761 = vmul.f32 %v757, 0.5
    %v762 = vmul.f32 %v758, 0.5
    %v763 = vtanh.pop %v760
    %v764 = vtanh.pop %v761
    %v765 = vtanh.pop %v762
    %v766 = vmul.f32 %v763, 0.5
    %v767 = vmul.f32 %v764, 0.5
    %v768 = vmul.f32 %v765, 0.5
    %v769 = vadd.f32 %v766, 0.5
    %v770 = vadd.f32 %v767, 0.5
    %v771 = vadd.f32 %v768, 0.5
    %v772 = vtanh.pop %v759
    %v773 = vmul.f32 %v770, %v606
    %v774 = vmul.f32 %v769, %v772
    %v775 = vadd.f32 %v773, %v774
    %v776 = vtanh.pop %v775
    %v777 = vmul.f32 %v771, %v776
    %s778 = scalar_lea.vmem %s0, 128
    %v779 = vld [vmem:[%s778] sm:$0xff]
    %v780 = vld [vmem:[%s778 + $0x8] sm:$0xff]
    %v781 = vld [vmem:[%s778 + $0x10] sm:$0xff]
    %v782 = vld [vmem:[%s778 + $0x18] sm:$0xff]
    %783 = vmatprep.subr.mxu0 %v40
    %784 = vmatpush1.msra.mxu0 %v39
    %785 = vmatprep.subr.mxu0 %v44
    %786 = vmatpush1.msra.mxu0 %v43
    %787 = vmatprep.subr.mxu0 %v48
    %788 = vmatpush1.msra.mxu0 %v47
    %789 = vmatprep.subr.mxu0 %v52
    %790 = vmatpush1.msra.mxu0 %v51
    %791 = vmatprep.subr.mxu0 %v56
    %792 = vmatpush1.msra.mxu0 %v55
    %793 = vmatprep.subr.mxu0 %v60
    %794 = vmatpush1.msra.mxu0 %v59
    %795 = vmatprep.subr.mxu0 %v64
    %796 = vmatpush1.msra.mxu0 %v63
    %797 = vmatprep.subr.mxu0 %v68
    %798 = vmatpush1.msra.mxu0 %v67
    %799 = vmatprep.subr.mxu0 %v72
    %800 = vmatpush1.msra.mxu0 %v71
    %801 = vmatprep.subr.mxu0 %v76
    %802 = vmatpush1.msra.mxu0 %v75
    %803 = vmatprep.subr.mxu0 %v80
    %804 = vmatpush1.msra.mxu0 %v79
    %805 = vmatprep.subr.mxu0 %v84
    %806 = vmatpush1.msra.mxu0 %v83
    %807 = vmatprep.subr.mxu0 %v88
    %808 = vmatpush1.msra.mxu0 %v87
    %809 = vmatprep.subr.mxu0 %v92
    %810 = vmatpush1.msra.mxu0 %v91
    %811 = vmatprep.subr.mxu0 %v96
    %812 = vmatpush1.msra.mxu0 %v95
    %813 = vmatprep.subr.mxu0 %v100
    %814 = vmatpush1.msra.mxu0 %v99
    %815 = vmatprep.subr.mxu0 0.0
    %816 = vmatpush1.msra.mxu0 0.0
    %817 = vmatprep.subr.mxu0 0.0
    %818 = vmatpush1.msra.mxu0 0.0
    %819 = vmatprep.subr.mxu0 0.0
    %820 = vmatpush1.msra.mxu0 0.0
    %821 = vmatprep.subr.mxu0 0.0
    %822 = vmatpush1.msra.mxu0 0.0
    %823 = vmatprep.subr.mxu0 0.0
    %824 = vmatpush1.msra.mxu0 0.0
    %825 = vmatprep.subr.mxu0 0.0
    %826 = vmatpush1.msra.mxu0 0.0
    %827 = vmatprep.subr.mxu0 0.0
    %828 = vmatpush1.msra.mxu0 0.0
    %829 = vmatprep.subr.mxu0 0.0
    %830 = vmatpush1.msra.mxu0 0.0
    %831 = vmatprep.subr.mxu0 0.0
    %832 = vmatpush1.msra.mxu0 0.0
    %833 = vmatprep.subr.mxu0 0.0
    %834 = vmatpush1.msra.mxu0 0.0
    %835 = vmatprep.subr.mxu0 0.0
    %836 = vmatpush1.msra.mxu0 0.0
    %837 = vmatprep.subr.mxu0 0.0
    %838 = vmatpush1.msra.mxu0 0.0
    %839 = vmatprep.subr.mxu0 0.0
    %840 = vmatpush1.msra.mxu0 0.0
    %841 = vmatprep.subr.mxu0 0.0
    %842 = vmatpush1.msra.mxu0 0.0
    %843 = vmatprep.subr.mxu0 0.0
    %844 = vmatpush1.msra.mxu0 0.0
    %845 = vmatprep.subr.mxu0 0.0
    %846 = vmatpush1.msra.mxu0 0.0
    %847 = vmatprep.mubr.f32.mxu0 0.0
    %848 = vmatmul.mubr.f32.gmra.mrb[0].mxu0 %v777
    %v849 = vpop.f32.mrb[0].mxu0
    %v850 = vadd.f32 0.0, %v849
    %v851 = vpop.f32.mrb[0].mxu0
    %v852 = vadd.f32 0.0, %v851
    %853 = vdwg.mxu0
    %854 = vmatprep.subr.mxu0 %v42
    %855 = vmatpush1.msra.mxu0 %v41
    %856 = vmatprep.subr.mxu0 %v46
    %857 = vmatpush1.msra.mxu0 %v45
    %858 = vmatprep.subr.mxu0 %v50
    %859 = vmatpush1.msra.mxu0 %v49
    %860 = vmatprep.subr.mxu0 %v54
    %861 = vmatpush1.msra.mxu0 %v53
    %862 = vmatprep.subr.mxu0 %v58
    %863 = vmatpush1.msra.mxu0 %v57
    %864 = vmatprep.subr.mxu0 %v62
    %865 = vmatpush1.msra.mxu0 %v61
    %866 = vmatprep.subr.mxu0 %v66
    %867 = vmatpush1.msra.mxu0 %v65
    %868 = vmatprep.subr.mxu0 %v70
    %869 = vmatpush1.msra.mxu0 %v69
    %870 = vmatprep.subr.mxu0 %v74
    %871 = vmatpush1.msra.mxu0 %v73
    %872 = vmatprep.subr.mxu0 %v78
    %873 = vmatpush1.msra.mxu0 %v77
    %874 = vmatprep.subr.mxu0 %v82
    %875 = vmatpush1.msra.mxu0 %v81
    %876 = vmatprep.subr.mxu0 %v86
    %877 = vmatpush1.msra.mxu0 %v85
    %878 = vmatprep.subr.mxu0 %v90
    %879 = vmatpush1.msra.mxu0 %v89
    %880 = vmatprep.subr.mxu0 %v94
    %881 = vmatpush1.msra.mxu0 %v93
    %882 = vmatprep.subr.mxu0 %v98
    %883 = vmatpush1.msra.mxu0 %v97
    %884 = vmatprep.subr.mxu0 %v102
    %885 = vmatpush1.msra.mxu0 %v101
    %886 = vmatprep.subr.mxu0 0.0
    %887 = vmatpush1.msra.mxu0 0.0
    %888 = vmatprep.subr.mxu0 0.0
    %889 = vmatpush1.msra.mxu0 0.0
    %890 = vmatprep.subr.mxu0 0.0
    %891 = vmatpush1.msra.mxu0 0.0
    %892 = vmatprep.subr.mxu0 0.0
    %893 = vmatpush1.msra.mxu0 0.0
    %894 = vmatprep.subr.mxu0 0.0
    %895 = vmatpush1.msra.mxu0 0.0
    %896 = vmatprep.subr.mxu0 0.0
    %897 = vmatpush1.msra.mxu0 0.0
    %898 = vmatprep.subr.mxu0 0.0
    %899 = vmatpush1.msra.mxu0 0.0
    %900 = vmatprep.subr.mxu0 0.0
    %901 = vmatpush1.msra.mxu0 0.0
    %902 = vmatprep.subr.mxu0 0.0
    %903 = vmatpush1.msra.mxu0 0.0
    %904 = vmatprep.subr.mxu0 0.0
    %905 = vmatpush1.msra.mxu0 0.0
    %906 = vmatprep.subr.mxu0 0.0
    %907 = vmatpush1.msra.mxu0 0.0
    %908 = vmatprep.subr.mxu0 0.0
    %909 = vmatpush1.msra.mxu0 0.0
    %910 = vmatprep.subr.mxu0 0.0
    %911 = vmatpush1.msra.mxu0 0.0
    %912 = vmatprep.subr.mxu0 0.0
    %913 = vmatpush1.msra.mxu0 0.0
    %914 = vmatprep.subr.mxu0 0.0
    %915 = vmatpush1.msra.mxu0 0.0
    %916 = vmatprep.subr.mxu0 0.0
    %917 = vmatpush1.msra.mxu0 0.0
    %918 = vmatprep.mubr.f32.mxu0 0.0
    %919 = vmatmul.mubr.f32.gmra.mrb[0].mxu0 %v777
    %v920 = vpop.f32.mrb[0].mxu0
    %v921 = vadd.f32 0.0, %v920
    %v922 = vpop.f32.mrb[0].mxu0
    %v923 = vadd.f32 0.0, %v922
    %924 = vdwg.mxu0
    %v925 = vadd.f32 %v779, %v850
    %v926 = vadd.f32 %v780, %v852
    %v927 = vadd.f32 %v781, %v921
    %v928 = vadd.f32 %v782, %v923
    %v929 = vmul.f32 %v925, 0.5
    %v930 = vmul.f32 %v926, 0.5
    %v931 = vmul.f32 %v927, 0.5
    %v932 = vtanh.pop %v929
    %v933 = vtanh.pop %v930
    %v934 = vtanh.pop %v931
    %v935 = vmul.f32 %v932, 0.5
    %v936 = vmul.f32 %v933, 0.5
    %v937 = vmul.f32 %v934, 0.5
    %v938 = vadd.f32 %v935, 0.5
    %v939 = vadd.f32 %v936, 0.5
    %v940 = vadd.f32 %v937, 0.5
    %v941 = vtanh.pop %v928
    %v942 = vmul.f32 %v939, %v775
    %v943 = vmul.f32 %v938, %v941
    %v944 = vadd.f32 %v942, %v943
    %v945 = vtanh.pop %v944
    %v946 = vmul.f32 %v940, %v945
    %s947 = scalar_lea.vmem %s0, 160
    %v948 = vld [vmem:[%s947] sm:$0xff]
    %v949 = vld [vmem:[%s947 + $0x8] sm:$0xff]
    %v950 = vld [vmem:[%s947 + $0x10] sm:$0xff]
    %v951 = vld [vmem:[%s947 + $0x18] sm:$0xff]
    %952 = vmatprep.subr.mxu0 %v40
    %953 = vmatpush1.msra.mxu0 %v39
    %954 = vmatprep.subr.mxu0 %v44
    %955 = vmatpush1.msra.mxu0 %v43
    %956 = vmatprep.subr.mxu0 %v48
    %957 = vmatpush1.msra.mxu0 %v47
    %958 = vmatprep.subr.mxu0 %v52
    %959 = vmatpush1.msra.mxu0 %v51
    %960 = vmatprep.subr.mxu0 %v56
    %961 = vmatpush1.msra.mxu0 %v55
    %962 = vmatprep.subr.mxu0 %v60
    %963 = vmatpush1.msra.mxu0 %v59
    %964 = vmatprep.subr.mxu0 %v64
    %965 = vmatpush1.msra.mxu0 %v63
    %966 = vmatprep.subr.mxu0 %v68
    %967 = vmatpush1.msra.mxu0 %v67
    %968 = vmatprep.subr.mxu0 %v72
    %969 = vmatpush1.msra.mxu0 %v71
    %970 = vmatprep.subr.mxu0 %v76
    %971 = vmatpush1.msra.mxu0 %v75
    %972 = vmatprep.subr.mxu0 %v80
    %973 = vmatpush1.msra.mxu0 %v79
    %974 = vmatprep.subr.mxu0 %v84
    %975 = vmatpush1.msra.mxu0 %v83
    %976 = vmatprep.subr.mxu0 %v88
    %977 = vmatpush1.msra.mxu0 %v87
    %978 = vmatprep.subr.mxu0 %v92
    %979 = vmatpush1.msra.mxu0 %v91
    %980 = vmatprep.subr.mxu0 %v96
    %981 = vmatpush1.msra.mxu0 %v95
    %982 = vmatprep.subr.mxu0 %v100
    %983 = vmatpush1.msra.mxu0 %v99
    %984 = vmatprep.subr.mxu0 0.0
    %985 = vmatpush1.msra.mxu0 0.0
    %986 = vmatprep.subr.mxu0 0.0
    %987 = vmatpush1.msra.mxu0 0.0
    %988 = vmatprep.subr.mxu0 0.0
    %989 = vmatpush1.msra.mxu0 0.0
    %990 = vmatprep.subr.mxu0 0.0
    %991 = vmatpush1.msra.mxu0 0.0
    %992 = vmatprep.subr.mxu0 0.0
    %993 = vmatpush1.msra.mxu0 0.0
    %994 = vmatprep.subr.mxu0 0.0
    %995 = vmatpush1.msra.mxu0 0.0
    %996 = vmatprep.subr.mxu0 0.0
    %997 = vmatpush1.msra.mxu0 0.0
    %998 = vmatprep.subr.mxu0 0.0
    %999 = vmatpush1.msra.mxu0 0.0
    %1000 = vmatprep.subr.mxu0 0.0
    %1001 = vmatpush1.msra.mxu0 0.0
    %1002 = vmatprep.subr.mxu0 0.0
    %1003 = vmatpush1.msra.mxu0 0.0
    %1004 = vmatprep.subr.mxu0 0.0
    %1005 = vmatpush1.msra.mxu0 0.0
    %1006 = vmatprep.subr.mxu0 0.0
    %1007 = vmatpush1.msra.mxu0 0.0
    %1008 = vmatprep.subr.mxu0 0.0
    %1009 = vmatpush1.msra.mxu0 0.0
    %1010 = vmatprep.subr.mxu0 0.0
    %1011 = vmatpush1.msra.mxu0 0.0
    %1012 = vmatprep.subr.mxu0 0.0
    %1013 = vmatpush1.msra.mxu0 0.0
    %1014 = vmatprep.subr.mxu0 0.0
    %1015 = vmatpush1.msra.mxu0 0.0
    %1016 = vmatprep.mubr.f32.mxu0 0.0
    %1017 = vmatmul.mubr.f32.gmra.mrb[0].mxu0 %v946
    %v1018 = vpop.f32.mrb[0].mxu0
    %v1019 = vadd.f32 0.0, %v1018
    %v1020 = vpop.f32.mrb[0].mxu0
    %v1021 = vadd.f32 0.0, %v1020
    %1022 = vdwg.mxu0
    %1023 = vmatprep.subr.mxu0 %v42
    %1024 = vmatpush1.msra.mxu0 %v41
    %1025 = vmatprep.subr.mxu0 %v46
    %1026 = vmatpush1.msra.mxu0 %v45
    %1027 = vmatprep.subr.mxu0 %v50
    %1028 = vmatpush1.msra.mxu0 %v49
    %1029 = vmatprep.subr.mxu0 %v54
    %1030 = vmatpush1.msra.mxu0 %v53
    %1031 = vmatprep.subr.mxu0 %v58
    %1032 = vmatpush1.msra.mxu0 %v57
    %1033 = vmatprep.subr.mxu0 %v62
    %1034 = vmatpush1.msra.mxu0 %v61
    %1035 = vmatprep.subr.mxu0 %v66
    %1036 = vmatpush1.msra.mxu0 %v65
    %1037 = vmatprep.subr.mxu0 %v70
    %1038 = vmatpush1.msra.mxu0 %v69
    %1039 = vmatprep.subr.mxu0 %v74
    %1040 = vmatpush1.msra.mxu0 %v73
    %1041 = vmatprep.subr.mxu0 %v78
    %1042 = vmatpush1.msra.mxu0 %v77
    %1043 = vmatprep.subr.mxu0 %v82
    %1044 = vmatpush1.msra.mxu0 %v81
    %1045 = vmatprep.subr.mxu0 %v86
    %1046 = vmatpush1.msra.mxu0 %v85
    %1047 = vmatprep.subr.mxu0 %v90
    %1048 = vmatpush1.msra.mxu0 %v89
    %1049 = vmatprep.subr.mxu0 %v94
    %1050 = vmatpush1.msra.mxu0 %v93
    %1051 = vmatprep.subr.mxu0 %v98
    %1052 = vmatpush1.msra.mxu0 %v97
    %1053 = vmatprep.subr.mxu0 %v102
    %1054 = vmatpush1.msra.mxu0 %v101
    %1055 = vmatprep.subr.mxu0 0.0
    %1056 = vmatpush1.msra.mxu0 0.0
    %1057 = vmatprep.subr.mxu0 0.0
    %1058 = vmatpush1.msra.mxu0 0.0
    %1059 = vmatprep.subr.mxu0 0.0
    %1060 = vmatpush1.msra.mxu0 0.0
    %1061 = vmatprep.subr.mxu0 0.0
    %1062 = vmatpush1.msra.mxu0 0.0
    %1063 = vmatprep.subr.mxu0 0.0
    %1064 = vmatpush1.msra.mxu0 0.0
    %1065 = vmatprep.subr.mxu0 0.0
    %1066 = vmatpush1.msra.mxu0 0.0
    %1067 = vmatprep.subr.mxu0 0.0
    %1068 = vmatpush1.msra.mxu0 0.0
    %1069 = vmatprep.subr.mxu0 0.0
    %1070 = vmatpush1.msra.mxu0 0.0
    %1071 = vmatprep.subr.mxu0 0.0
    %1072 = vmatpush1.msra.mxu0 0.0
    %1073 = vmatprep.subr.mxu0 0.0
    %1074 = vmatpush1.msra.mxu0 0.0
    %1075 = vmatprep.subr.mxu0 0.0
    %1076 = vmatpush1.msra.mxu0 0.0
    %1077 = vmatprep.subr.mxu0 0.0
    %1078 = vmatpush1.msra.mxu0 0.0
    %1079 = vmatprep.subr.mxu0 0.0
    %1080 = vmatpush1.msra.mxu0 0.0
    %1081 = vmatprep.subr.mxu0 0.0
    %1082 = vmatpush1.msra.mxu0 0.0
    %1083 = vmatprep.subr.mxu0 0.0
    %1084 = vmatpush1.msra.mxu0 0.0
    %1085 = vmatprep.subr.mxu0 0.0
    %1086 = vmatpush1.msra.mxu0 0.0
    %1087 = vmatprep.mubr.f32.mxu0 0.0
    %1088 = vmatmul.mubr.f32.gmra.mrb[0].mxu0 %v946
    %v1089 = vpop.f32.mrb[0].mxu0
    %v1090 = vadd.f32 0.0, %v1089
    %v1091 = vpop.f32.mrb[0].mxu0
    %v1092 = vadd.f32 0.0, %v1091
    %1093 = vdwg.mxu0
    %v1094 = vadd.f32 %v948, %v1019
    %v1095 = vadd.f32 %v949, %v1021
    %v1096 = vadd.f32 %v950, %v1090
    %v1097 = vadd.f32 %v951, %v1092
    %v1098 = vmul.f32 %v1094, 0.5
    %v1099 = vmul.f32 %v1095, 0.5
    %v1100 = vmul.f32 %v1096, 0.5
    %v1101 = vtanh.pop %v1098
    %v1102 = vtanh.pop %v1099
    %v1103 = vtanh.pop %v1100
    %v1104 = vmul.f32 %v1101, 0.5
    %v1105 = vmul.f32 %v1102, 0.5
    %v1106 = vmul.f32 %v1103, 0.5
    %v1107 = vadd.f32 %v1104, 0.5
    %v1108 = vadd.f32 %v1105, 0.5
    %v1109 = vadd.f32 %v1106, 0.5
    %v1110 = vtanh.pop %v1097
    %v1111 = vmul.f32 %v1108, %v944
    %v1112 = vmul.f32 %v1107, %v1110
    %v1113 = vadd.f32 %v1111, %v1112
    %v1114 = vtanh.pop %v1113
    %v1115 = vmul.f32 %v1109, %v1114
    %s1116 = scalar_lea.vmem %s0, 192
    %v1117 = vld [vmem:[%s1116] sm:$0xff]
    %v1118 = vld [vmem:[%s1116 + $0x8] sm:$0xff]
    %v1119 = vld [vmem:[%s1116 + $0x10] sm:$0xff]
    %v1120 = vld [vmem:[%s1116 + $0x18] sm:$0xff]
    %1121 = vmatprep.subr.mxu0 %v40
    %1122 = vmatpush1.msra.mxu0 %v39
    %1123 = vmatprep.subr.mxu0 %v44
    %1124 = vmatpush1.msra.mxu0 %v43
    %1125 = vmatprep.subr.mxu0 %v48
    %1126 = vmatpush1.msra.mxu0 %v47
    %1127 = vmatprep.subr.mxu0 %v52
    %1128 = vmatpush1.msra.mxu0 %v51
    %1129 = vmatprep.subr.mxu0 %v56
    %1130 = vmatpush1.msra.mxu0 %v55
    %1131 = vmatprep.subr.mxu0 %v60
    %1132 = vmatpush1.msra.mxu0 %v59
    %1133 = vmatprep.subr.mxu0 %v64
    %1134 = vmatpush1.msra.mxu0 %v63
    %1135 = vmatprep.subr.mxu0 %v68
    %1136 = vmatpush1.msra.mxu0 %v67
    %1137 = vmatprep.subr.mxu0 %v72
    %1138 = vmatpush1.msra.mxu0 %v71
    %1139 = vmatprep.subr.mxu0 %v76
    %1140 = vmatpush1.msra.mxu0 %v75
    %1141 = vmatprep.subr.mxu0 %v80
    %1142 = vmatpush1.msra.mxu0 %v79
    %1143 = vmatprep.subr.mxu0 %v84
    %1144 = vmatpush1.msra.mxu0 %v83
    %1145 = vmatprep.subr.mxu0 %v88
    %1146 = vmatpush1.msra.mxu0 %v87
    %1147 = vmatprep.subr.mxu0 %v92
    %1148 = vmatpush1.msra.mxu0 %v91
    %1149 = vmatprep.subr.mxu0 %v96
    %1150 = vmatpush1.msra.mxu0 %v95
    %1151 = vmatprep.subr.mxu0 %v100
    %1152 = vmatpush1.msra.mxu0 %v99
    %1153 = vmatprep.subr.mxu0 0.0
    %1154 = vmatpush1.msra.mxu0 0.0
    %1155 = vmatprep.subr.mxu0 0.0
    %1156 = vmatpush1.msra.mxu0 0.0
    %1157 = vmatprep.subr.mxu0 0.0
    %1158 = vmatpush1.msra.mxu0 0.0
    %1159 = vmatprep.subr.mxu0 0.0
    %1160 = vmatpush1.msra.mxu0 0.0
    %1161 = vmatprep.subr.mxu0 0.0
    %1162 = vmatpush1.msra.mxu0 0.0
    %1163 = vmatprep.subr.mxu0 0.0
    %1164 = vmatpush1.msra.mxu0 0.0
    %1165 = vmatprep.subr.mxu0 0.0
    %1166 = vmatpush1.msra.mxu0 0.0
    %1167 = vmatprep.subr.mxu0 0.0
    %1168 = vmatpush1.msra.mxu0 0.0
    %1169 = vmatprep.subr.mxu0 0.0
    %1170 = vmatpush1.msra.mxu0 0.0
    %1171 = vmatprep.subr.mxu0 0.0
    %1172 = vmatpush1.msra.mxu0 0.0
    %1173 = vmatprep.subr.mxu0 0.0
    %1174 = vmatpush1.msra.mxu0 0.0
    %1175 = vmatprep.subr.mxu0 0.0
    %1176 = vmatpush1.msra.mxu0 0.0
    %1177 = vmatprep.subr.mxu0 0.0
    %1178 = vmatpush1.msra.mxu0 0.0
    %1179 = vmatprep.subr.mxu0 0.0
    %1180 = vmatpush1.msra.mxu0 0.0
    %1181 = vmatprep.subr.mxu0 0.0
    %1182 = vmatpush1.msra.mxu0 0.0
    %1183 = vmatprep.subr.mxu0 0.0
    %1184 = vmatpush1.msra.mxu0 0.0
    %1185 = vmatprep.mubr.f32.mxu0 0.0
    %1186 = vmatmul.mubr.f32.gmra.mrb[0].mxu0 %v1115
    %v1187 = vpop.f32.mrb[0].mxu0
    %v1188 = vadd.f32 0.0, %v1187
    %v1189 = vpop.f32.mrb[0].mxu0
    %v1190 = vadd.f32 0.0, %v1189
    %1191 = vdwg.mxu0
    %1192 = vmatprep.subr.mxu0 %v42
    %1193 = vmatpush1.msra.mxu0 %v41
    %1194 = vmatprep.subr.mxu0 %v46
    %1195 = vmatpush1.msra.mxu0 %v45
    %1196 = vmatprep.subr.mxu0 %v50
    %1197 = vmatpush1.msra.mxu0 %v49
    %1198 = vmatprep.subr.mxu0 %v54
    %1199 = vmatpush1.msra.mxu0 %v53
    %1200 = vmatprep.subr.mxu0 %v58
    %1201 = vmatpush1.msra.mxu0 %v57
    %1202 = vmatprep.subr.mxu0 %v62
    %1203 = vmatpush1.msra.mxu0 %v61
    %1204 = vmatprep.subr.mxu0 %v66
    %1205 = vmatpush1.msra.mxu0 %v65
    %1206 = vmatprep.subr.mxu0 %v70
    %1207 = vmatpush1.msra.mxu0 %v69
    %1208 = vmatprep.subr.mxu0 %v74
    %1209 = vmatpush1.msra.mxu0 %v73
    %1210 = vmatprep.subr.mxu0 %v78
    %1211 = vmatpush1.msra.mxu0 %v77
    %1212 = vmatprep.subr.mxu0 %v82
    %1213 = vmatpush1.msra.mxu0 %v81
    %1214 = vmatprep.subr.mxu0 %v86
    %1215 = vmatpush1.msra.mxu0 %v85
    %1216 = vmatprep.subr.mxu0 %v90
    %1217 = vmatpush1.msra.mxu0 %v89
    %1218 = vmatprep.subr.mxu0 %v94
    %1219 = vmatpush1.msra.mxu0 %v93
    %1220 = vmatprep.subr.mxu0 %v98
    %1221 = vmatpush1.msra.mxu0 %v97
    %1222 = vmatprep.subr.mxu0 %v102
    %1223 = vmatpush1.msra.mxu0 %v101
    %1224 = vmatprep.subr.mxu0 0.0
    %1225 = vmatpush1.msra.mxu0 0.0
    %1226 = vmatprep.subr.mxu0 0.0
    %1227 = vmatpush1.msra.mxu0 0.0
    %1228 = vmatprep.subr.mxu0 0.0
    %1229 = vmatpush1.msra.mxu0 0.0
    %1230 = vmatprep.subr.mxu0 0.0
    %1231 = vmatpush1.msra.mxu0 0.0
    %1232 = vmatprep.subr.mxu0 0.0
    %1233 = vmatpush1.msra.mxu0 0.0
    %1234 = vmatprep.subr.mxu0 0.0
    %1235 = vmatpush1.msra.mxu0 0.0
    %1236 = vmatprep.subr.mxu0 0.0
    %1237 = vmatpush1.msra.mxu0 0.0
    %1238 = vmatprep.subr.mxu0 0.0
    %1239 = vmatpush1.msra.mxu0 0.0
    %1240 = vmatprep.subr.mxu0 0.0
    %1241 = vmatpush1.msra.mxu0 0.0
    %1242 = vmatprep.subr.mxu0 0.0
    %1243 = vmatpush1.msra.mxu0 0.0
    %1244 = vmatprep.subr.mxu0 0.0
    %1245 = vmatpush1.msra.mxu0 0.0
    %1246 = vmatprep.subr.mxu0 0.0
    %1247 = vmatpush1.msra.mxu0 0.0
    %1248 = vmatprep.subr.mxu0 0.0
    %1249 = vmatpush1.msra.mxu0 0.0
    %1250 = vmatprep.subr.mxu0 0.0
    %1251 = vmatpush1.msra.mxu0 0.0
    %1252 = vmatprep.subr.mxu0 0.0
    %1253 = vmatpush1.msra.mxu0 0.0
    %1254 = vmatprep.subr.mxu0 0.0
    %1255 = vmatpush1.msra.mxu0 0.0
    %1256 = vmatprep.mubr.f32.mxu0 0.0
    %1257 = vmatmul.mubr.f32.gmra.mrb[0].mxu0 %v1115
    %v1258 = vpop.f32.mrb[0].mxu0
    %v1259 = vadd.f32 0.0, %v1258
    %v1260 = vpop.f32.mrb[0].mxu0
    %v1261 = vadd.f32 0.0, %v1260
    %1262 = vdwg.mxu0
    %v1263 = vadd.f32 %v1117, %v1188
    %v1264 = vadd.f32 %v1118, %v1190
    %v1265 = vadd.f32 %v1119, %v1259
    %v1266 = vadd.f32 %v1120, %v1261
    %v1267 = vmul.f32 %v1263, 0.5
    %v1268 = vmul.f32 %v1264, 0.5
    %v1269 = vmul.f32 %v1265, 0.5
    %v1270 = vtanh.pop %v1267
    %v1271 = vtanh.pop %v1268
    %v1272 = vtanh.pop %v1269
    %v1273 = vmul.f32 %v1270, 0.5
    %v1274 = vmul.f32 %v1271, 0.5
    %v1275 = vmul.f32 %v1272, 0.5
    %v1276 = vadd.f32 %v1273, 0.5
    %v1277 = vadd.f32 %v1274, 0.5
    %v1278 = vadd.f32 %v1275, 0.5
    %v1279 = vtanh.pop %v1266
    %v1280 = vmul.f32 %v1277, %v1113
    %v1281 = vmul.f32 %v1276, %v1279
    %v1282 = vadd.f32 %v1280, %v1281
    %v1283 = vtanh.pop %v1282
    %v1284 = vmul.f32 %v1278, %v1283
    %s1285 = scalar_lea.vmem %s0, 224
    %v1286 = vld [vmem:[%s1285] sm:$0xff]
    %v1287 = vld [vmem:[%s1285 + $0x8] sm:$0xff]
    %v1288 = vld [vmem:[%s1285 + $0x10] sm:$0xff]
    %v1289 = vld [vmem:[%s1285 + $0x18] sm:$0xff]
    %1290 = vmatprep.subr.mxu0 %v40
    %1291 = vmatpush1.msra.mxu0 %v39
    %1292 = vmatprep.subr.mxu0 %v44
    %1293 = vmatpush1.msra.mxu0 %v43
    %1294 = vmatprep.subr.mxu0 %v48
    %1295 = vmatpush1.msra.mxu0 %v47
    %1296 = vmatprep.subr.mxu0 %v52
    %1297 = vmatpush1.msra.mxu0 %v51
    %1298 = vmatprep.subr.mxu0 %v56
    %1299 = vmatpush1.msra.mxu0 %v55
    %1300 = vmatprep.subr.mxu0 %v60
    %1301 = vmatpush1.msra.mxu0 %v59
    %1302 = vmatprep.subr.mxu0 %v64
    %1303 = vmatpush1.msra.mxu0 %v63
    %1304 = vmatprep.subr.mxu0 %v68
    %1305 = vmatpush1.msra.mxu0 %v67
    %1306 = vmatprep.subr.mxu0 %v72
    %1307 = vmatpush1.msra.mxu0 %v71
    %1308 = vmatprep.subr.mxu0 %v76
    %1309 = vmatpush1.msra.mxu0 %v75
    %1310 = vmatprep.subr.mxu0 %v80
    %1311 = vmatpush1.msra.mxu0 %v79
    %1312 = vmatprep.subr.mxu0 %v84
    %1313 = vmatpush1.msra.mxu0 %v83
    %1314 = vmatprep.subr.mxu0 %v88
    %1315 = vmatpush1.msra.mxu0 %v87
    %1316 = vmatprep.subr.mxu0 %v92
    %1317 = vmatpush1.msra.mxu0 %v91
    %1318 = vmatprep.subr.mxu0 %v96
    %1319 = vmatpush1.msra.mxu0 %v95
    %1320 = vmatprep.subr.mxu0 %v100
    %1321 = vmatpush1.msra.mxu0 %v99
    %1322 = vmatprep.subr.mxu0 0.0
    %1323 = vmatpush1.msra.mxu0 0.0
    %1324 = vmatprep.subr.mxu0 0.0
    %1325 = vmatpush1.msra.mxu0 0.0
    %1326 = vmatprep.subr.mxu0 0.0
    %1327 = vmatpush1.msra.mxu0 0.0
    %1328 = vmatprep.subr.mxu0 0.0
    %1329 = vmatpush1.msra.mxu0 0.0
    %1330 = vmatprep.subr.mxu0 0.0
    %1331 = vmatpush1.msra.mxu0 0.0
    %1332 = vmatprep.subr.mxu0 0.0
    %1333 = vmatpush1.msra.mxu0 0.0
    %1334 = vmatprep.subr.mxu0 0.0
    %1335 = vmatpush1.msra.mxu0 0.0
    %1336 = vmatprep.subr.mxu0 0.0
    %1337 = vmatpush1.msra.mxu0 0.0
    %1338 = vmatprep.subr.mxu0 0.0
    %1339 = vmatpush1.msra.mxu0 0.0
    %1340 = vmatprep.subr.mxu0 0.0
    %1341 = vmatpush1.msra.mxu0 0.0
    %1342 = vmatprep.subr.mxu0 0.0
    %1343 = vmatpush1.msra.mxu0 0.0
    %1344 = vmatprep.subr.mxu0 0.0
    %1345 = vmatpush1.msra.mxu0 0.0
    %1346 = vmatprep.subr.mxu0 0.0
    %1347 = vmatpush1.msra.mxu0 0.0
    %1348 = vmatprep.subr.mxu0 0.0
    %1349 = vmatpush1.msra.mxu0 0.0
    %1350 = vmatprep.subr.mxu0 0.0
    %1351 = vmatpush1.msra.mxu0 0.0
    %1352 = vmatprep.subr.mxu0 0.0
    %1353 = vmatpush1.msra.mxu0 0.0
    %1354 = vmatprep.mubr.f32.mxu0 0.0
    %1355 = vmatmul.mubr.f32.gmra.mrb[0].mxu0 %v1284
    %v1356 = vpop.f32.mrb[0].mxu0
    %v1357 = vadd.f32 0.0, %v1356
    %v1358 = vpop.f32.mrb[0].mxu0
    %v1359 = vadd.f32 0.0, %v1358
    %1360 = vdwg.mxu0
    %1361 = vmatprep.subr.mxu0 %v42
    %1362 = vmatpush1.msra.mxu0 %v41
    %1363 = vmatprep.subr.mxu0 %v46
    %1364 = vmatpush1.msra.mxu0 %v45
    %1365 = vmatprep.subr.mxu0 %v50
    %1366 = vmatpush1.msra.mxu0 %v49
    %1367 = vmatprep.subr.mxu0 %v54
    %1368 = vmatpush1.msra.mxu0 %v53
    %1369 = vmatprep.subr.mxu0 %v58
    %1370 = vmatpush1.msra.mxu0 %v57
    %1371 = vmatprep.subr.mxu0 %v62
    %1372 = vmatpush1.msra.mxu0 %v61
    %1373 = vmatprep.subr.mxu0 %v66
    %1374 = vmatpush1.msra.mxu0 %v65
    %1375 = vmatprep.subr.mxu0 %v70
    %1376 = vmatpush1.msra.mxu0 %v69
    %1377 = vmatprep.subr.mxu0 %v74
    %1378 = vmatpush1.msra.mxu0 %v73
    %1379 = vmatprep.subr.mxu0 %v78
    %1380 = vmatpush1.msra.mxu0 %v77
    %1381 = vmatprep.subr.mxu0 %v82
    %1382 = vmatpush1.msra.mxu0 %v81
    %1383 = vmatprep.subr.mxu0 %v86
    %1384 = vmatpush1.msra.mxu0 %v85
    %1385 = vmatprep.subr.mxu0 %v90
    %1386 = vmatpush1.msra.mxu0 %v89
    %1387 = vmatprep.subr.mxu0 %v94
    %1388 = vmatpush1.msra.mxu0 %v93
    %1389 = vmatprep.subr.mxu0 %v98
    %1390 = vmatpush1.msra.mxu0 %v97
    %1391 = vmatprep.subr.mxu0 %v102
    %1392 = vmatpush1.msra.mxu0 %v101
    %1393 = vmatprep.subr.mxu0 0.0
    %1394 = vmatpush1.msra.mxu0 0.0
    %1395 = vmatprep.subr.mxu0 0.0
    %1396 = vmatpush1.msra.mxu0 0.0
    %1397 = vmatprep.subr.mxu0 0.0
    %1398 = vmatpush1.msra.mxu0 0.0
    %1399 = vmatprep.subr.mxu0 0.0
    %1400 = vmatpush1.msra.mxu0 0.0
    %1401 = vmatprep.subr.mxu0 0.0
    %1402 = vmatpush1.msra.mxu0 0.0
    %1403 = vmatprep.subr.mxu0 0.0
    %1404 = vmatpush1.msra.mxu0 0.0
    %1405 = vmatprep.subr.mxu0 0.0
    %1406 = vmatpush1.msra.mxu0 0.0
    %1407 = vmatprep.subr.mxu0 0.0
    %1408 = vmatpush1.msra.mxu0 0.0
    %1409 = vmatprep.subr.mxu0 0.0
    %1410 = vmatpush1.msra.mxu0 0.0
    %1411 = vmatprep.subr.mxu0 0.0
    %1412 = vmatpush1.msra.mxu0 0.0
    %1413 = vmatprep.subr.mxu0 0.0
    %1414 = vmatpush1.msra.mxu0 0.0
    %1415 = vmatprep.subr.mxu0 0.0
    %1416 = vmatpush1.msra.mxu0 0.0
    %1417 = vmatprep.subr.mxu0 0.0
    %1418 = vmatpush1.msra.mxu0 0.0
    %1419 = vmatprep.subr.mxu0 0.0
    %1420 = vmatpush1.msra.mxu0 0.0
    %1421 = vmatprep.subr.mxu0 0.0
    %1422 = vmatpush1.msra.mxu0 0.0
    %1423 = vmatprep.subr.mxu0 0.0
    %1424 = vmatpush1.msra.mxu0 0.0
    %1425 = vmatprep.mubr.f32.mxu0 0.0
    %1426 = vmatmul.mubr.f32.gmra.mrb[0].mxu0 %v1284
    %v1427 = vpop.f32.mrb[0].mxu0
    %v1428 = vadd.f32 0.0, %v1427
    %v1429 = vpop.f32.mrb[0].mxu0
    %v1430 = vadd.f32 0.0, %v1429
    %1431 = vdwg.mxu0
    %v1432 = vadd.f32 %v1286, %v1357
    %v1433 = vadd.f32 %v1287, %v1359
    %v1434 = vadd.f32 %v1288, %v1428
    %v1435 = vadd.f32 %v1289, %v1430
    %v1436 = vmul.f32 %v1432, 0.5
    %v1437 = vmul.f32 %v1433, 0.5
    %v1438 = vmul.f32 %v1434, 0.5
    %v1439 = vtanh.pop %v1436
    %v1440 = vtanh.pop %v1437
    %v1441 = vtanh.pop %v1438
    %v1442 = vmul.f32 %v1439, 0.5
    %v1443 = vmul.f32 %v1440, 0.5
    %v1444 = vmul.f32 %v1441, 0.5
    %v1445 = vadd.f32 %v1442, 0.5
    %v1446 = vadd.f32 %v1443, 0.5
    %v1447 = vadd.f32 %v1444, 0.5
    %v1448 = vtanh.pop %v1435
    %v1449 = vmul.f32 %v1446, %v1282
    %v1450 = vmul.f32 %v1445, %v1448
    %v1451 = vadd.f32 %v1449, %v1450
    %v1452 = vtanh.pop %v1451
    %v1453 = vmul.f32 %v1447, %v1452
    %1454 = vst [vmem:[#allocation2] sm:$0xff] %v1453
    %1455 = vst [vmem:[#allocation3] sm:$0xff] %v1451
    // Predicated region
    $region26: #{lstm_model_forward.1} parent=1 // pred_check
      %p1456 = pneg %p31
    $region27: #{lstm_model_forward.1} parent=1 // pred_check_branch
      %1458 = sbr.rel (%p1456) target = $region29
    $region28: #{lstm_model_forward.1} parent=1 // pred_region
      %v1459 = vld [vmem:[%s2] sm:$0xff]
      %v1460 = vld [vmem:[%s2 + $0x8] sm:$0xff]
      %v1461 = vld [vmem:[%s2 + $0x10] sm:$0xff]
      %v1462 = vld [vmem:[%s2 + $0x18] sm:$0xff]
      %v1463 = vld [vmem:[%s2 + $0x20] sm:$0xff]
      %v1464 = vld [vmem:[%s2 + $0x28] sm:$0xff]
      %v1465 = vld [vmem:[%s2 + $0x30] sm:$0xff]
      %v1466 = vld [vmem:[%s2 + $0x38] sm:$0xff]
      %v1467 = vld [vmem:[%s2 + $0x40] sm:$0xff]
      %v1468 = vld [vmem:[%s2 + $0x48] sm:$0xff]
      %v1469 = vld [vmem:[%s2 + $0x50] sm:$0xff]
      %v1470 = vld [vmem:[%s2 + $0x58] sm:$0xff]
      %v1471 = vld [vmem:[%s2 + $0x60] sm:$0xff]
      %v1472 = vld [vmem:[%s2 + $0x68] sm:$0xff]
      %v1473 = vld [vmem:[%s2 + $0x70] sm:$0xff]
      %v1474 = vld [vmem:[%s2 + $0x78] sm:$0xff]
      %v1475 = vld [vmem:[%s3] sm:$0x1]
      %v1477 = vlaneseq
      %v1478 = vshrl.u32 %v1477, 7
      %v1479 = vsub.s32 0, %v1478
      %v1480 = vrot.slane %v1475, %v1479
      %1482 = vmatprep.subr.mxu0 0.0
      %1483 = vmatpush1.msra.mxu0 %v1459
      %1484 = vmatprep.subr.mxu0 0.0
      %1485 = vmatpush1.msra.mxu0 %v1460
      %1486 = vmatprep.subr.mxu0 0.0
      %1487 = vmatpush1.msra.mxu0 %v1461
      %1488 = vmatprep.subr.mxu0 0.0
      %1489 = vmatpush1.msra.mxu0 %v1462
      %1490 = vmatprep.subr.mxu0 0.0
      %1491 = vmatpush1.msra.mxu0 %v1463
      %1492 = vmatprep.subr.mxu0 0.0
      %1493 = vmatpush1.msra.mxu0 %v1464
      %1494 = vmatprep.subr.mxu0 0.0
      %1495 = vmatpush1.msra.mxu0 %v1465
      %1496 = vmatprep.subr.mxu0 0.0
      %1497 = vmatpush1.msra.mxu0 %v1466
      %1498 = vmatprep.subr.mxu0 0.0
      %1499 = vmatpush1.msra.mxu0 %v1467
      %1500 = vmatprep.subr.mxu0 0.0
      %1501 = vmatpush1.msra.mxu0 %v1468
      %1502 = vmatprep.subr.mxu0 0.0
      %1503 = vmatpush1.msra.mxu0 %v1469
      %1504 = vmatprep.subr.mxu0 0.0
      %1505 = vmatpush1.msra.mxu0 %v1470
      %1506 = vmatprep.subr.mxu0 0.0
      %1507 = vmatpush1.msra.mxu0 %v1471
      %1508 = vmatprep.subr.mxu0 0.0
      %1509 = vmatpush1.msra.mxu0 %v1472
      %1510 = vmatprep.subr.mxu0 0.0
      %1511 = vmatpush1.msra.mxu0 %v1473
      %1512 = vmatprep.subr.mxu0 0.0
      %1513 = vmatpush1.msra.mxu0 %v1474
      %1514 = vmatprep.subr.mxu0 0.0
      %1515 = vmatpush1.msra.mxu0 0.0
      %1516 = vmatprep.subr.mxu0 0.0
      %1517 = vmatpush1.msra.mxu0 0.0
      %1518 = vmatprep.subr.mxu0 0.0
      %1519 = vmatpush1.msra.mxu0 0.0
      %1520 = vmatprep.subr.mxu0 0.0
      %1521 = vmatpush1.msra.mxu0 0.0
      %1522 = vmatprep.subr.mxu0 0.0
      %1523 = vmatpush1.msra.mxu0 0.0
      %1524 = vmatprep.subr.mxu0 0.0
      %1525 = vmatpush1.msra.mxu0 0.0
      %1526 = vmatprep.subr.mxu0 0.0
      %1527 = vmatpush1.msra.mxu0 0.0
      %1528 = vmatprep.subr.mxu0 0.0
      %1529 = vmatpush1.msra.mxu0 0.0
      %1530 = vmatprep.subr.mxu0 0.0
      %1531 = vmatpush1.msra.mxu0 0.0
      %1532 = vmatprep.subr.mxu0 0.0
      %1533 = vmatpush1.msra.mxu0 0.0
      %1534 = vmatprep.subr.mxu0 0.0
      %1535 = vmatpush1.msra.mxu0 0.0
      %1536 = vmatprep.subr.mxu0 0.0
      %1537 = vmatpush1.msra.mxu0 0.0
      %1538 = vmatprep.subr.mxu0 0.0
      %1539 = vmatpush1.msra.mxu0 0.0
      %1540 = vmatprep.subr.mxu0 0.0
      %1541 = vmatpush1.msra.mxu0 0.0
      %1542 = vmatprep.subr.mxu0 0.0
      %1543 = vmatpush1.msra.mxu0 0.0
      %1544 = vmatprep.subr.mxu0 0.0
      %1545 = vmatpush1.msra.mxu0 0.0
      %1546 = vmatprep.mubr.f32.mxu0 0.0
      %1547 = vmatmul.mubr.f32.gmra.mrb[0].mxu0 %v1453
      %v1548 = vpop.f32.mrb[0].mxu0
      %v1549 = vadd.f32 %v1480, %v1548
      %v1550 = vpop.f32.mrb[0].mxu0
      %1551 = vdwg.mxu0
      %1552 = vst [vmem:[%s4] sm:$0xff] %v1549
    $region29: #{lstm_model_forward.1} parent=1 // pred_fallthru
      _
    // Predicated region
    $region30: #{lstm_model_forward.1} parent=1 // pred_check
      _
    $region31: #{lstm_model_forward.1} parent=1 // pred_check_branch
      %1554 = sbr.rel (0) target = $region33
    $region32: #{lstm_model_forward.1} parent=1 // pred_region
      _
    $region33: #{lstm_model_forward.1} parent=1 // pred_fallthru
      _
    // Predicated region
    $region34: #{lstm_model_forward.1} parent=1 // pred_check
      _
    $region35: #{lstm_model_forward.1} parent=1 // pred_check_branch
      %1556 = sbr.rel (0) target = $region37
    $region36: #{lstm_model_forward.1} parent=1 // pred_region
      _
    $region37: #{lstm_model_forward.1} parent=1 // pred_fallthru
      _
    %1557 = vsyncpa [#allocation5], 1

</llo_original>
